<compile_context>
chip_gen: v7x
topology: tpu7x:2x2x1
jax: 0.10.0
libtpu: 0.0.40
codegen_flags: <defaults>
</compile_context>

<pallas_src>
import functools

import numpy as np
import jax
import jax.numpy as jnp
from jax import lax
from jax.experimental import pallas as pl
from jax.experimental.pallas import tpu as pltpu

FILTER_LENGTH = 16                       # scaled-down stand-in for 1024
N_OVERLAP = 4
HOP = FILTER_LENGTH // N_OVERLAP
CUTOFF = FILTER_LENGTH // 2 + 1
CPAD = ((CUTOFF + 127) // 128) * 128     # lane-dense padded frequency axis
TINY_F32 = float(np.finfo(np.float32).tiny)


def _stft_bases(n_fft=FILTER_LENGTH, hop=HOP, cpad=CPAD):
    """Deterministic fused + lane-padded STFT bases (periodic hann window), f32."""
    fourier = np.fft.fft(np.eye(n_fft))
    cutoff = n_fft // 2 + 1
    fb = np.vstack([np.real(fourier[:cutoff]), np.imag(fourier[:cutoff])])   # (2C, N)
    scale = n_fft / float(hop)
    ib = np.linalg.pinv(scale * fb).T                                        # (2C, N)
    n = np.arange(n_fft)
    hann = 0.5 - 0.5 * np.cos(2.0 * np.pi * n / n_fft)                       # periodic hann
    fb = fb * hann[None, :]
    ib = ib * hann[None, :]

    # fused forward basis:  frames (T,N) @ fb_full (N, 2*CPAD) -> [real | imag]
    fb_full = np.zeros((n_fft, 2 * cpad), np.float32)
    fb_full[:, :cutoff] = fb[:cutoff].T
    fb_full[:, cpad:cpad + cutoff] = fb[cutoff:].T
    # fused inverse basis:  [real*gain | imag*gain] (T, 2*CPAD) @ ib_full (2*CPAD, N)
    ib_full = np.zeros((2 * cpad, n_fft), np.float32)
    ib_full[:cutoff] = ib[:cutoff]
    ib_full[cpad:cpad + cutoff] = ib[cutoff:]

    wsq = (hann ** 2).astype(np.float32)                                     # window_sumsquare term
    return fb_full, ib_full, wsq


def _denoise_kernel(audio_ref, fb_ref, ib_ref, bias_ref, invw_ref, out_ref,
                    frames_ref, rid_ref, *, nov, hop, r_tile, f_tile, f_pad,
                    t_frames, cpad):
    """One (batch, time-tile) grid step.

    audio_ref:  (A_TILE, hop) f32   reflect-padded audio rows incl. (nov-1)-row halos
    fb_ref:     (n_fft, 2*CPAD) bf16 fused forward basis
    ib_ref:     (2*CPAD, n_fft) bf16 fused inverse basis
    bias_ref:   (1, CPAD) f32        bias_spec * strength (zero-padded)
    invw_ref:   (R_TILE, hop) f32    (n_fft/hop) / window_sumsquare (precomputed)
    out_ref:    (R_TILE, hop) f32
    frames_ref: (F_PAD, n_fft) f32   frames scratch (one K=n_fft dot)
    rid_ref:    (F_PAD, 2*CPAD) bf16 gained spectrum scratch (no concat)
    """
    j = pl.program_id(1)
    n_fft = nov * hop
    audio = audio_ref[...]                                  # (A_TILE, hop) f32

    # ---- build frames scratch: frame f <- audio rows f..f+nov-1 (implicit striding)
    for k in range(nov):
        frames_ref[pl.ds(0, f_tile), pl.ds(k * hop, hop)] = audio[k:k + f_tile, :]
    if f_pad > f_tile:                                      # zero the M-padding rows once
        frames_ref[pl.ds(f_tile, f_pad - f_tile), :] = jnp.zeros(
            (f_pad - f_tile, n_fft), jnp.float32)

    # ---- forward STFT: single fused K=n_fft dot, bf16 operands, f32 accumulation
    ri = jnp.dot(frames_ref[...].astype(jnp.bfloat16), fb_ref[...],
                 preferred_element_type=jnp.float32)        # (F_PAD, 2*CPAD)
    real = ri[:, :cpad]
    imag = ri[:, cpad:]

    # ---- bias removal as a per-bin gain: no sqrt, no divides
    # mag_d*cos(phase) == real * max(1 - bias*strength/|z|, 0), same for imag.
    magsq = real * real + imag * imag
    inv_mag = jnp.where(magsq > 0.0, lax.rsqrt(magsq), 0.0)
    gain = jnp.maximum(1.0 - bias_ref[...] * inv_mag, 0.0)

    # halo / tile-padding mask: frames outside [0, t_frames) must not contribute
    f_idx = lax.broadcasted_iota(jnp.int32, (f_pad, 1), 0)
    t_idx = f_idx + (j * r_tile - (nov - 1))
    valid = jnp.logical_and(t_idx >= 0, t_idx < t_frames)
    gain = gain * valid.astype(jnp.float32)

    # gained spectrum written into lane-aligned halves of the bf16 scratch (no concat)
    rid_ref[pl.ds(0, f_pad), pl.ds(0, cpad)] = (real * gain).astype(jnp.bfloat16)
    rid_ref[pl.ds(0, f_pad), pl.ds(cpad, cpad)] = (imag * gain).astype(jnp.bfloat16)

    # ---- inverse STFT: single fused dot, then gather-style overlap-add (no acc scratch)
    contrib = jnp.dot(rid_ref[...], ib_ref[...],
                      preferred_element_type=jnp.float32)   # (F_PAD, n_fft)
    acc = contrib[nov - 1:nov - 1 + r_tile, 0:hop]
    for m in range(1, nov):
        acc = acc + contrib[nov - 1 - m:nov - 1 - m + r_tile, m * hop:(m + 1) * hop]

    # window_sumsquare correction + (n_fft/hop) scale, precomputed as one reciprocal
    out_ref[...] = acc * invw_ref[...]


def waveglow_bias_remover_forward(audio, bias_spec, strength=0.1):
    """audio: (B, num_samples) f32, bias_spec: (1, CUTOFF, 1) f32 -> (num_samples,)."""
    n_fft, hop, nov, cutoff, cpad = FILTER_LENGTH, HOP, N_OVERLAP, CUTOFF, CPAD
    fb_full, ib_full, wsq = _stft_bases()

    audio = jnp.asarray(audio, jnp.float32)
    B, num_samples = audio.shape
    # TODO(synk): production audio needs explicit pad/trim to a hop multiple here.
    assert num_samples % hop == 0, "toy harness requires num_samples divisible by hop"

    padded = jnp.pad(audio, ((0, 0), (n_fft // 2, n_fft // 2)), mode="reflect")
    padded_len = num_samples + n_fft
    rows = padded_len // hop                        # == t_frames + nov - 1
    t_frames = rows - nov + 1

    # ---- time tiling: R_TILE output rows / grid step, (nov-1)-row halos recomputed.
    # Small tile for the toy harness so the multi-tile + halo-mask path is exercised.
    r_tile = 256 if rows >= 256 else 8              # multiple of 8
    num_tiles = -(-rows // r_tile)
    rows_pad = num_tiles * r_tile
    a_tile = r_tile + 2 * (nov - 1)                 # audio rows per tile (both halos)
    f_tile = r_tile + nov - 1                       # frames per tile
    f_pad = ((f_tile + 7) // 8) * 8                 # sublane-rounded M for both dots

    # overlapping audio tiles built in the wrapper (only 2*(nov-1) duplicated rows/tile)
    audio3d = padded.reshape(B, rows, hop)
    ext = jnp.pad(audio3d, ((0, 0), (nov - 1, rows_pad - rows + nov - 1), (0, 0)))
    audio_tiles = jnp.stack(
        [ext[:, j * r_tile:j * r_tile + a_tile, :] for j in range(num_tiles)], axis=1)

    # librosa window_sumsquare -> precomputed reciprocal including n_fft/hop scale
    full_len = rows * hop
    wsum = np.zeros(full_len, np.float32)
    for i in range(t_frames):
        wsum[i * hop:i * hop + n_fft] += wsq
    inv_wsum = np.where(wsum > TINY_F32, 1.0 / wsum, 1.0) * float(n_fft) / float(hop)
    inv_full = np.zeros(rows_pad * hop, np.float32)
    inv_full[:full_len] = inv_wsum
    inv_wsum2d = jnp.asarray(inv_full.reshape(rows_pad, hop))

    # bias*strength hoisted out of the kernel, zero-padded to the lane-dense width
    bias_scaled = jnp.zeros((1, cpad), jnp.float32).at[:, :cutoff].set(
        jnp.asarray(bias_spec, jnp.float32)[:, :, 0] * strength)

    fb_bf16 = jnp.asarray(fb_full).astype(jnp.bfloat16)
    ib_bf16 = jnp.asarray(ib_full).astype(jnp.bfloat16)

    kernel = functools.partial(
        _denoise_kernel, nov=nov, hop=hop, r_tile=r_tile, f_tile=f_tile,
        f_pad=f_pad, t_frames=t_frames, cpad=cpad)

    # explicit scoped-VMEM budget from the chosen tile (x2 headroom, capped for v7x)
    base_b = 2 * (n_fft * 2 * cpad * 2)                    # fb + ib (bf16, single-buffered)
    stream_b = 2 * (a_tile + 2 * r_tile) * hop * 4         # audio/invw/out (double-buffered)
    scratch_b = f_pad * n_fft * 4 + f_pad * 2 * cpad * 2   # frames (f32) + rid (bf16)
    temp_b = f_pad * (2 * cpad * 4 * 3 + n_fft * 4)        # ri/gain temporaries + contrib
    vmem_bytes = int(min(56 * 2 ** 20,
                         max(32 * 2 ** 20, 2 * (base_b + stream_b + scratch_b + temp_b))))

    def _run(single_buffer_consts):
        const_kw = dict(pipeline_mode=pl.Buffered(1)) if single_buffer_consts else {}
        in_specs = [
            pl.BlockSpec((None, None, a_tile, hop), lambda b, j: (b, j, 0, 0)),   # audio tile
            pl.BlockSpec((n_fft, 2 * cpad), lambda b, j: (0, 0), **const_kw),     # fwd basis
            pl.BlockSpec((2 * cpad, n_fft), lambda b, j: (0, 0), **const_kw),     # inv basis
            pl.BlockSpec((1, cpad), lambda b, j: (0, 0), **const_kw),             # bias*strength
            pl.BlockSpec((r_tile, hop), lambda b, j: (j, 0)),                     # 1/window_sumsq
        ]
        return pl.pallas_call(
            kernel,
            out_shape=jax.ShapeDtypeStruct((B, rows_pad, hop), jnp.float32),
            grid=(B, num_tiles),
            in_specs=in_specs,
            out_specs=pl.BlockSpec((None, r_tile, hop), lambda b, j: (b, j, 0)),
            scratch_shapes=[pltpu.VMEM((f_pad, n_fft), jnp.float32),      # frames
                            pltpu.VMEM((f_pad, 2 * cpad), jnp.bfloat16)], # gained spectrum
            compiler_params=pltpu.CompilerParams(
                dimension_semantics=("parallel", "parallel"),
                vmem_limit_bytes=vmem_bytes),
        )(audio_tiles, fb_bf16, ib_bf16, bias_scaled, inv_wsum2d)

    try:
        out = _run(True)          # single-buffer constant bases (frees ~10 MB at prod scale)
    except Exception:
        # TODO(synk): pipeline_mode=pl.Buffered(1) not supported by this jax build;
        # fall back to default double-buffered constant operands.
        out = _run(False)

    flat = out.reshape(B, rows_pad * hop)
    trimmed = flat[:, n_fft // 2: rows * hop - n_fft // 2]  # trim N/2 both sides
    return trimmed[0]                                       # audio_denoised[:, 0][0]


def _reference_forward(audio, bias_spec, strength=0.1):
    """Pure numpy reference (uses atan2/cos/sin like the PyTorch STFT), f32 bases."""
    n_fft, hop, cutoff, cpad = FILTER_LENGTH, HOP, CUTOFF, CPAD
    fb_full, ib_full, wsq = _stft_bases()
    fbr_t = fb_full[:, :cutoff]
    fbi_t = fb_full[:, cpad:cpad + cutoff]
    ibr = ib_full[:cutoff]
    ibi = ib_full[cpad:cpad + cutoff]

    audio = np.asarray(audio, dtype=np.float32)
    padded = np.pad(audio, ((0, 0), (n_fft // 2, n_fft // 2)), mode="reflect")
    t_frames = (padded.shape[1] - n_fft) // hop + 1
    idx = np.arange(t_frames)[:, None] * hop + np.arange(n_fft)[None, :]
    frames = padded[:, idx]
    real = frames @ fbr_t
    imag = frames @ fbi_t
    mag = np.sqrt(real ** 2 + imag ** 2)
    phase = np.arctan2(imag, real)
    bias = np.asarray(bias_spec)[:, :, 0]
    mag_d = np.maximum(mag - bias[None] * strength, 0.0)
    contrib = (mag_d * np.cos(phase)) @ ibr + (mag_d * np.sin(phase)) @ ibi
    full_len = (t_frames - 1) * hop + n_fft
    out = np.zeros((audio.shape[0], full_len), np.float32)
    wsum = np.zeros(full_len, np.float32)
    for t in range(t_frames):
        out[:, t * hop:t * hop + n_fft] += contrib[:, t]
        wsum[t * hop:t * hop + n_fft] += wsq
    nzi = wsum > TINY_F32
    out[:, nzi] = out[:, nzi] / wsum[nzi]
    out = out * (n_fft / hop)
    out = out[:, n_fft // 2: full_len - n_fft // 2]
    return out[0]


if __name__ == "__main__":
    key = jax.random.PRNGKey(0)
    k_audio, k_bias = jax.random.split(key)
    B, num_samples = 2, 64
    audio = jax.random.normal(k_audio, (B, num_samples), dtype=jnp.float32)
    # TODO(synk): real bias_spec comes from waveglow.infer(zeros) + STFT; synthesized here.
    bias_spec = jnp.abs(jax.random.normal(k_bias, (1, CUTOFF, 1), dtype=jnp.float32))

    out = waveglow_bias_remover_forward(audio, bias_spec, strength=0.1)
    out = jax.block_until_ready(out)

    ref = _reference_forward(np.asarray(audio), np.asarray(bias_spec), strength=0.1)
    assert out.shape == (num_samples,)
    assert np.all(np.isfinite(np.asarray(out)))
    np.testing.assert_allclose(np.asarray(out), ref, rtol=5e-2, atol=5e-2)
    print("KERNEL_OK")
</pallas_src>

<mosaic_0001>
module attributes {stable_mosaic.version = 11 : i64} {
  func.func @_denoise_kernel(%arg0: i32, %arg1: i32, %arg2: memref<1x1x14x4xf32, #tpu.memory_space<vmem>>, %arg3: memref<16x256xbf16, #tpu.memory_space<vmem>>, %arg4: memref<256x16xbf16, #tpu.memory_space<vmem>>, %arg5: memref<1x128xf32, #tpu.memory_space<vmem>>, %arg6: memref<8x4xf32, #tpu.memory_space<vmem>>, %arg7: memref<1x8x4xf32, #tpu.memory_space<vmem>>, %arg8: memref<16x16xf32, #tpu.memory_space<vmem>>, %arg9: memref<16x256xbf16, #tpu.memory_space<vmem>>) attributes {dimension_semantics = [#tpu.dimension_semantics<parallel>, #tpu.dimension_semantics<parallel>], iteration_bounds = array<i64: 2, 3>, scalar_prefetch = 0 : i64, scratch_operands = 2 : i64, tpu.core_type = #tpu.core_type<tc>, window_params = [{transform_indices = @transform_0, window_bounds = array<i64: 1, 1, 14, 4>}, {pipeline_mode = #tpu.pipeline_mode<synchronous>, transform_indices = @transform_1, window_bounds = array<i64: 16, 256>}, {pipeline_mode = #tpu.pipeline_mode<synchronous>, transform_indices = @transform_2, window_bounds = array<i64: 256, 16>}, {pipeline_mode = #tpu.pipeline_mode<synchronous>, transform_indices = @transform_3, window_bounds = array<i64: 1, 128>}, {transform_indices = @transform_4, window_bounds = array<i64: 8, 4>}, {transform_indices = @transform_5, window_bounds = array<i64: 1, 8, 4>}]} {
    %c0 = arith.constant 0 : index
    %c0_0 = arith.constant 0 : index
    %c0_1 = arith.constant 0 : index
    %c0_2 = arith.constant 0 : index
    %0 = vector.load %arg2[%c0, %c0_0, %c0_1, %c0_2] : memref<1x1x14x4xf32, #tpu.memory_space<vmem>>, vector<1x1x14x4xf32>
    %1 = vector.shape_cast %0 : vector<1x1x14x4xf32> to vector<14x4xf32>
    %2 = vector.extract_strided_slice %1 {offsets = [0, 0], sizes = [11, 4], strides = [1, 1]} : vector<14x4xf32> to vector<11x4xf32>
    %c0_3 = arith.constant 0 : index
    %c0_4 = arith.constant 0 : index
    %3 = vector.load %arg8[%c0_3, %c0_4] : memref<16x16xf32, #tpu.memory_space<vmem>>, vector<11x4xf32>
    tpu.vector_store %arg8[%c0_3, %c0_4], %2 {strides = array<i32>} : memref<16x16xf32, #tpu.memory_space<vmem>>, vector<11x4xf32>,
    %4 = vector.extract_strided_slice %1 {offsets = [1, 0], sizes = [11, 4], strides = [1, 1]} : vector<14x4xf32> to vector<11x4xf32>
    %c0_5 = arith.constant 0 : index
    %c4 = arith.constant 4 : index
    %5 = vector.load %arg8[%c0_5, %c4] : memref<16x16xf32, #tpu.memory_space<vmem>>, vector<11x4xf32>
    tpu.vector_store %arg8[%c0_5, %c4], %4 {strides = array<i32>} : memref<16x16xf32, #tpu.memory_space<vmem>>, vector<11x4xf32>,
    %6 = vector.extract_strided_slice %1 {offsets = [2, 0], sizes = [11, 4], strides = [1, 1]} : vector<14x4xf32> to vector<11x4xf32>
    %c0_6 = arith.constant 0 : index
    %c8 = arith.constant 8 : index
    %7 = vector.load %arg8[%c0_6, %c8] : memref<16x16xf32, #tpu.memory_space<vmem>>, vector<11x4xf32>
    tpu.vector_store %arg8[%c0_6, %c8], %6 {strides = array<i32>} : memref<16x16xf32, #tpu.memory_space<vmem>>, vector<11x4xf32>,
    %8 = vector.extract_strided_slice %1 {offsets = [3, 0], sizes = [11, 4], strides = [1, 1]} : vector<14x4xf32> to vector<11x4xf32>
    %c0_7 = arith.constant 0 : index
    %c12 = arith.constant 12 : index
    %9 = vector.load %arg8[%c0_7, %c12] : memref<16x16xf32, #tpu.memory_space<vmem>>, vector<11x4xf32>
    tpu.vector_store %arg8[%c0_7, %c12], %8 {strides = array<i32>} : memref<16x16xf32, #tpu.memory_space<vmem>>, vector<11x4xf32>,
    %cst = arith.constant 0.000000e+00 : f32
    %10 = vector.broadcast %cst : f32 to vector<5x16xf32>
    %c11 = arith.constant 11 : index
    %c0_8 = arith.constant 0 : index
    %11 = vector.load %arg8[%c11, %c0_8] : memref<16x16xf32, #tpu.memory_space<vmem>>, vector<5x16xf32>
    tpu.vector_store %arg8[%c11, %c0_8], %10 {strides = array<i32>} : memref<16x16xf32, #tpu.memory_space<vmem>>, vector<5x16xf32>,
    %c0_9 = arith.constant 0 : index
    %c0_10 = arith.constant 0 : index
    %12 = vector.load %arg8[%c0_9, %c0_10] : memref<16x16xf32, #tpu.memory_space<vmem>>, vector<16x16xf32>
    %13 = arith.truncf %12 : vector<16x16xf32> to vector<16x16xbf16>
    %c0_11 = arith.constant 0 : index
    %c0_12 = arith.constant 0 : index
    %14 = vector.load %arg3[%c0_11, %c0_12] : memref<16x256xbf16, #tpu.memory_space<vmem>>, vector<16x256xbf16>
    %cst_13 = arith.constant dense<0.000000e+00> : vector<16x256xf32>
    %15 = tpu.matmul %13, %14, %cst_13 {dimension_numbers = #tpu.dot_dimension_numbers<[1], [0], [0], [1], [0, 0, 1, 1], [], []>} : vector<16x16xbf16>, vector<16x256xbf16>, vector<16x256xf32> -> vector<16x256xf32>
    %16 = vector.extract_strided_slice %15 {offsets = [0, 0], sizes = [16, 128], strides = [1, 1]} : vector<16x256xf32> to vector<16x128xf32>
    %17 = vector.extract_strided_slice %15 {offsets = [0, 128], sizes = [16, 128], strides = [1, 1]} : vector<16x256xf32> to vector<16x128xf32>
    %18 = arith.mulf %16, %16 : vector<16x128xf32>
    %19 = arith.mulf %17, %17 : vector<16x128xf32>
    %20 = arith.addf %18, %19 : vector<16x128xf32>
    %cst_14 = arith.constant 0.000000e+00 : f32
    %21 = vector.broadcast %cst_14 : f32 to vector<16x128xf32>
    %22 = arith.cmpf ogt, %20, %21 : vector<16x128xf32>
    %23 = math.rsqrt %20 : vector<16x128xf32>
    %cst_15 = arith.constant 0.000000e+00 : f32
    %24 = vector.broadcast %cst_15 : f32 to vector<16x128xf32>
    %25 = arith.select %22, %23, %24 : vector<16x128xi1>, vector<16x128xf32>
    %c0_16 = arith.constant 0 : index
    %c0_17 = arith.constant 0 : index
    %26 = vector.load %arg5[%c0_16, %c0_17] : memref<1x128xf32, #tpu.memory_space<vmem>>, vector<1x128xf32>
    %27 = vector.broadcast %26 : vector<1x128xf32> to vector<16x128xf32>
    %28 = arith.mulf %27, %25 : vector<16x128xf32>
    %cst_18 = arith.constant 1.000000e+00 : f32
    %29 = vector.broadcast %cst_18 : f32 to vector<16x128xf32>
    %30 = arith.subf %29, %28 : vector<16x128xf32>
    %cst_19 = arith.constant 0.000000e+00 : f32
    %31 = vector.broadcast %cst_19 : f32 to vector<16x128xf32>
    %32 = arith.maximumf %30, %31 : vector<16x128xf32>
    %33 = tpu.iota {dimensions = array<i32: 0>} : vector<16x1xi32>
    %c8_i32 = arith.constant 8 : i32
    %34 = arith.muli %arg1, %c8_i32 : i32
    %c3_i32 = arith.constant 3 : i32
    %35 = arith.subi %34, %c3_i32 : i32
    %36 = vector.broadcast %35 : i32 to vector<16x1xi32>
    %37 = arith.addi %33, %36 : vector<16x1xi32>
    %c0_i32 = arith.constant 0 : i32
    %38 = vector.broadcast %c0_i32 : i32 to vector<16x1xi32>
    %39 = arith.cmpi sge, %37, %38 : vector<16x1xi32>
    %c17_i32 = arith.constant 17 : i32
    %40 = vector.broadcast %c17_i32 : i32 to vector<16x1xi32>
    %41 = arith.cmpi slt, %37, %40 : vector<16x1xi32>
    %42 = arith.andi %39, %41 : vector<16x1xi1>
    %43 = arith.extui %42 : vector<16x1xi1> to vector<16x1xi32>
    %44 = arith.sitofp %43 : vector<16x1xi32> to vector<16x1xf32>
    %45 = vector.broadcast %44 : vector<16x1xf32> to vector<16x128xf32>
    %46 = arith.mulf %32, %45 : vector<16x128xf32>
    %47 = arith.mulf %16, %46 : vector<16x128xf32>
    %48 = arith.truncf %47 : vector<16x128xf32> to vector<16x128xbf16>
    %c0_20 = arith.constant 0 : index
    %c0_21 = arith.constant 0 : index
    %49 = vector.load %arg9[%c0_20, %c0_21] : memref<16x256xbf16, #tpu.memory_space<vmem>>, vector<16x128xbf16>
    tpu.vector_store %arg9[%c0_20, %c0_21], %48 {strides = array<i32>} : memref<16x256xbf16, #tpu.memory_space<vmem>>, vector<16x128xbf16>,
    %50 = arith.mulf %17, %46 : vector<16x128xf32>
    %51 = arith.truncf %50 : vector<16x128xf32> to vector<16x128xbf16>
    %c0_22 = arith.constant 0 : index
    %c128 = arith.constant 128 : index
    %52 = vector.load %arg9[%c0_22, %c128] : memref<16x256xbf16, #tpu.memory_space<vmem>>, vector<16x128xbf16>
    tpu.vector_store %arg9[%c0_22, %c128], %51 {strides = array<i32>} : memref<16x256xbf16, #tpu.memory_space<vmem>>, vector<16x128xbf16>,
    %c0_23 = arith.constant 0 : index
    %c0_24 = arith.constant 0 : index
    %53 = vector.load %arg9[%c0_23, %c0_24] : memref<16x256xbf16, #tpu.memory_space<vmem>>, vector<16x256xbf16>
    %c0_25 = arith.constant 0 : index
    %c0_26 = arith.constant 0 : index
    %54 = vector.load %arg4[%c0_25, %c0_26] : memref<256x16xbf16, #tpu.memory_space<vmem>>, vector<256x16xbf16>
    %cst_27 = arith.constant dense<0.000000e+00> : vector<16x16xf32>
    %55 = tpu.matmul %53, %54, %cst_27 {dimension_numbers = #tpu.dot_dimension_numbers<[1], [0], [0], [1], [0, 0, 1, 1], [], []>} : vector<16x256xbf16>, vector<256x16xbf16>, vector<16x16xf32> -> vector<16x16xf32>
    %56 = vector.extract_strided_slice %55 {offsets = [3, 0], sizes = [8, 4], strides = [1, 1]} : vector<16x16xf32> to vector<8x4xf32>
    %57 = vector.extract_strided_slice %55 {offsets = [2, 4], sizes = [8, 4], strides = [1, 1]} : vector<16x16xf32> to vector<8x4xf32>
    %58 = arith.addf %56, %57 : vector<8x4xf32>
    %59 = vector.extract_strided_slice %55 {offsets = [1, 8], sizes = [8, 4], strides = [1, 1]} : vector<16x16xf32> to vector<8x4xf32>
    %60 = arith.addf %58, %59 : vector<8x4xf32>
    %61 = vector.extract_strided_slice %55 {offsets = [0, 12], sizes = [8, 4], strides = [1, 1]} : vector<16x16xf32> to vector<8x4xf32>
    %62 = arith.addf %60, %61 : vector<8x4xf32>
    %c0_28 = arith.constant 0 : index
    %c0_29 = arith.constant 0 : index
    %63 = vector.load %arg6[%c0_28, %c0_29] : memref<8x4xf32, #tpu.memory_space<vmem>>, vector<8x4xf32>
    %64 = arith.mulf %62, %63 : vector<8x4xf32>
    %c0_30 = arith.constant 0 : index
    %c0_31 = arith.constant 0 : index
    %c0_32 = arith.constant 0 : index
    %65 = vector.load %arg7[%c0_30, %c0_31, %c0_32] : memref<1x8x4xf32, #tpu.memory_space<vmem>>, vector<1x8x4xf32>
    %66 = vector.shape_cast %65 : vector<1x8x4xf32> to vector<8x4xf32>
    %67 = vector.shape_cast %64 : vector<8x4xf32> to vector<1x8x4xf32>
    tpu.vector_store %arg7[%c0_30, %c0_31, %c0_32], %67 {strides = array<i32>} : memref<1x8x4xf32, #tpu.memory_space<vmem>>, vector<1x8x4xf32>,
    return
  }
  func.func @transform_0(%arg0: i32, %arg1: i32) -> (i32, i32, i32, i32) {
    %c0_i32 = arith.constant 0 : i32
    %c0_i32_0 = arith.constant 0 : i32
    %c0_i32_1 = arith.constant 0 : i32
    return %arg0, %arg1, %c0_i32, %c0_i32_0 : i32, i32, i32, i32
  }
  func.func @transform_1(%arg0: i32, %arg1: i32) -> (i32, i32) {
    %c0_i32 = arith.constant 0 : i32
    %c0_i32_0 = arith.constant 0 : i32
    %c0_i32_1 = arith.constant 0 : i32
    return %c0_i32, %c0_i32_0 : i32, i32
  }
  func.func @transform_2(%arg0: i32, %arg1: i32) -> (i32, i32) {
    %c0_i32 = arith.constant 0 : i32
    %c0_i32_0 = arith.constant 0 : i32
    %c0_i32_1 = arith.constant 0 : i32
    return %c0_i32, %c0_i32_0 : i32, i32
  }
  func.func @transform_3(%arg0: i32, %arg1: i32) -> (i32, i32) {
    %c0_i32 = arith.constant 0 : i32
    %c0_i32_0 = arith.constant 0 : i32
    %c0_i32_1 = arith.constant 0 : i32
    return %c0_i32, %c0_i32_0 : i32, i32
  }
  func.func @transform_4(%arg0: i32, %arg1: i32) -> (i32, i32) {
    %c0_i32 = arith.constant 0 : i32
    %c0_i32_0 = arith.constant 0 : i32
    return %arg1, %c0_i32 : i32, i32
  }
  func.func @transform_5(%arg0: i32, %arg1: i32) -> (i32, i32, i32) {
    %c0_i32 = arith.constant 0 : i32
    %c0_i32_0 = arith.constant 0 : i32
    return %arg0, %arg1, %c0_i32 : i32, i32, i32
  }
}

module attributes {stable_mosaic.version = 11 : i64} {
  func.func @_denoise_kernel(%arg0: i32, %arg1: i32, %arg2: memref<1x1x14x4xf32, #tpu.memory_space<vmem>>, %arg3: memref<16x256xbf16, #tpu.memory_space<vmem>>, %arg4: memref<256x16xbf16, #tpu.memory_space<vmem>>, %arg5: memref<1x128xf32, #tpu.memory_space<vmem>>, %arg6: memref<8x4xf32, #tpu.memory_space<vmem>>, %arg7: memref<1x8x4xf32, #tpu.memory_space<vmem>>, %arg8: memref<16x16xf32, #tpu.memory_space<vmem>>, %arg9: memref<16x256xbf16, #tpu.memory_space<vmem>>) attributes {dimension_semantics = [#tpu.dimension_semantics<parallel>, #tpu.dimension_semantics<parallel>], iteration_bounds = array<i64: 2, 3>, scalar_prefetch = 0 : i64, scratch_operands = 2 : i64, tpu.core_type = #tpu.core_type<tc>, window_params = [{transform_indices = @transform_0, window_bounds = array<i64: 1, 1, 14, 4>}, {pipeline_mode = #tpu.pipeline_mode<synchronous>, transform_indices = @transform_1, window_bounds = array<i64: 16, 256>}, {pipeline_mode = #tpu.pipeline_mode<synchronous>, transform_indices = @transform_2, window_bounds = array<i64: 256, 16>}, {pipeline_mode = #tpu.pipeline_mode<synchronous>, transform_indices = @transform_3, window_bounds = array<i64: 1, 128>}, {transform_indices = @transform_4, window_bounds = array<i64: 8, 4>}, {transform_indices = @transform_5, window_bounds = array<i64: 1, 8, 4>}]} {
    %c0 = arith.constant 0 : index
    %c0_0 = arith.constant 0 : index
    %c0_1 = arith.constant 0 : index
    %c0_2 = arith.constant 0 : index
    %0 = vector.load %arg2[%c0, %c0_0, %c0_1, %c0_2] : memref<1x1x14x4xf32, #tpu.memory_space<vmem>>, vector<1x1x14x4xf32>
    %1 = vector.shape_cast %0 : vector<1x1x14x4xf32> to vector<14x4xf32>
    %2 = vector.extract_strided_slice %1 {offsets = [0, 0], sizes = [11, 4], strides = [1, 1]} : vector<14x4xf32> to vector<11x4xf32>
    %c0_3 = arith.constant 0 : index
    %c0_4 = arith.constant 0 : index
    %3 = vector.load %arg8[%c0_3, %c0_4] : memref<16x16xf32, #tpu.memory_space<vmem>>, vector<11x4xf32>
    tpu.vector_store %arg8[%c0_3, %c0_4], %2 {strides = array<i32>} : memref<16x16xf32, #tpu.memory_space<vmem>>, vector<11x4xf32>,
    %4 = vector.extract_strided_slice %1 {offsets = [1, 0], sizes = [11, 4], strides = [1, 1]} : vector<14x4xf32> to vector<11x4xf32>
    %c0_5 = arith.constant 0 : index
    %c4 = arith.constant 4 : index
    %5 = vector.load %arg8[%c0_5, %c4] : memref<16x16xf32, #tpu.memory_space<vmem>>, vector<11x4xf32>
    tpu.vector_store %arg8[%c0_5, %c4], %4 {strides = array<i32>} : memref<16x16xf32, #tpu.memory_space<vmem>>, vector<11x4xf32>,
    %6 = vector.extract_strided_slice %1 {offsets = [2, 0], sizes = [11, 4], strides = [1, 1]} : vector<14x4xf32> to vector<11x4xf32>
    %c0_6 = arith.constant 0 : index
    %c8 = arith.constant 8 : index
    %7 = vector.load %arg8[%c0_6, %c8] : memref<16x16xf32, #tpu.memory_space<vmem>>, vector<11x4xf32>
    tpu.vector_store %arg8[%c0_6, %c8], %6 {strides = array<i32>} : memref<16x16xf32, #tpu.memory_space<vmem>>, vector<11x4xf32>,
    %8 = vector.extract_strided_slice %1 {offsets = [3, 0], sizes = [11, 4], strides = [1, 1]} : vector<14x4xf32> to vector<11x4xf32>
    %c0_7 = arith.constant 0 : index
    %c12 = arith.constant 12 : index
    %9 = vector.load %arg8[%c0_7, %c12] : memref<16x16xf32, #tpu.memory_space<vmem>>, vector<11x4xf32>
    tpu.vector_store %arg8[%c0_7, %c12], %8 {strides = array<i32>} : memref<16x16xf32, #tpu.memory_space<vmem>>, vector<11x4xf32>,
    %cst = arith.constant 0.000000e+00 : f32
    %10 = vector.broadcast %cst : f32 to vector<5x16xf32>
    %c11 = arith.constant 11 : index
    %c0_8 = arith.constant 0 : index
    %11 = vector.load %arg8[%c11, %c0_8] : memref<16x16xf32, #tpu.memory_space<vmem>>, vector<5x16xf32>
    tpu.vector_store %arg8[%c11, %c0_8], %10 {strides = array<i32>} : memref<16x16xf32, #tpu.memory_space<vmem>>, vector<5x16xf32>,
    %c0_9 = arith.constant 0 : index
    %c0_10 = arith.constant 0 : index
    %12 = vector.load %arg8[%c0_9, %c0_10] : memref<16x16xf32, #tpu.memory_space<vmem>>, vector<16x16xf32>
    %13 = arith.truncf %12 : vector<16x16xf32> to vector<16x16xbf16>
    %c0_11 = arith.constant 0 : index
    %c0_12 = arith.constant 0 : index
    %14 = vector.load %arg3[%c0_11, %c0_12] : memref<16x256xbf16, #tpu.memory_space<vmem>>, vector<16x256xbf16>
    %cst_13 = arith.constant dense<0.000000e+00> : vector<16x256xf32>
    %15 = tpu.matmul %13, %14, %cst_13 {dimension_numbers = #tpu.dot_dimension_numbers<[1], [0], [0], [1], [0, 0, 1, 1], [], []>} : vector<16x16xbf16>, vector<16x256xbf16>, vector<16x256xf32> -> vector<16x256xf32>
    %16 = vector.extract_strided_slice %15 {offsets = [0, 0], sizes = [16, 128], strides = [1, 1]} : vector<16x256xf32> to vector<16x128xf32>
    %17 = vector.extract_strided_slice %15 {offsets = [0, 128], sizes = [16, 128], strides = [1, 1]} : vector<16x256xf32> to vector<16x128xf32>
    %18 = arith.mulf %16, %16 : vector<16x128xf32>
    %19 = arith.mulf %17, %17 : vector<16x128xf32>
    %20 = arith.addf %18, %19 : vector<16x128xf32>
    %cst_14 = arith.constant 0.000000e+00 : f32
    %21 = vector.broadcast %cst_14 : f32 to vector<16x128xf32>
    %22 = arith.cmpf ogt, %20, %21 : vector<16x128xf32>
    %23 = math.rsqrt %20 : vector<16x128xf32>
    %cst_15 = arith.constant 0.000000e+00 : f32
    %24 = vector.broadcast %cst_15 : f32 to vector<16x128xf32>
    %25 = arith.select %22, %23, %24 : vector<16x128xi1>, vector<16x128xf32>
    %c0_16 = arith.constant 0 : index
    %c0_17 = arith.constant 0 : index
    %26 = vector.load %arg5[%c0_16, %c0_17] : memref<1x128xf32, #tpu.memory_space<vmem>>, vector<1x128xf32>
    %27 = vector.broadcast %26 : vector<1x128xf32> to vector<16x128xf32>
    %28 = arith.mulf %27, %25 : vector<16x128xf32>
    %cst_18 = arith.constant 1.000000e+00 : f32
    %29 = vector.broadcast %cst_18 : f32 to vector<16x128xf32>
    %30 = arith.subf %29, %28 : vector<16x128xf32>
    %cst_19 = arith.constant 0.000000e+00 : f32
    %31 = vector.broadcast %cst_19 : f32 to vector<16x128xf32>
    %32 = arith.maximumf %30, %31 : vector<16x128xf32>
    %33 = tpu.iota {dimensions = array<i32: 0>} : vector<16x1xi32>
    %c8_i32 = arith.constant 8 : i32
    %34 = arith.muli %arg1, %c8_i32 : i32
    %c3_i32 = arith.constant 3 : i32
    %35 = arith.subi %34, %c3_i32 : i32
    %36 = vector.broadcast %35 : i32 to vector<16x1xi32>
    %37 = arith.addi %33, %36 : vector<16x1xi32>
    %c0_i32 = arith.constant 0 : i32
    %38 = vector.broadcast %c0_i32 : i32 to vector<16x1xi32>
    %39 = arith.cmpi sge, %37, %38 : vector<16x1xi32>
    %c17_i32 = arith.constant 17 : i32
    %40 = vector.broadcast %c17_i32 : i32 to vector<16x1xi32>
    %41 = arith.cmpi slt, %37, %40 : vector<16x1xi32>
    %42 = arith.andi %39, %41 : vector<16x1xi1>
    %43 = arith.extui %42 : vector<16x1xi1> to vector<16x1xi32>
    %44 = arith.sitofp %43 : vector<16x1xi32> to vector<16x1xf32>
    %45 = vector.broadcast %44 : vector<16x1xf32> to vector<16x128xf32>
    %46 = arith.mulf %32, %45 : vector<16x128xf32>
    %47 = arith.mulf %16, %46 : vector<16x128xf32>
    %48 = arith.truncf %47 : vector<16x128xf32> to vector<16x128xbf16>
    %c0_20 = arith.constant 0 : index
    %c0_21 = arith.constant 0 : index
    %49 = vector.load %arg9[%c0_20, %c0_21] : memref<16x256xbf16, #tpu.memory_space<vmem>>, vector<16x128xbf16>
    tpu.vector_store %arg9[%c0_20, %c0_21], %48 {strides = array<i32>} : memref<16x256xbf16, #tpu.memory_space<vmem>>, vector<16x128xbf16>,
    %50 = arith.mulf %17, %46 : vector<16x128xf32>
    %51 = arith.truncf %50 : vector<16x128xf32> to vector<16x128xbf16>
    %c0_22 = arith.constant 0 : index
    %c128 = arith.constant 128 : index
    %52 = vector.load %arg9[%c0_22, %c128] : memref<16x256xbf16, #tpu.memory_space<vmem>>, vector<16x128xbf16>
    tpu.vector_store %arg9[%c0_22, %c128], %51 {strides = array<i32>} : memref<16x256xbf16, #tpu.memory_space<vmem>>, vector<16x128xbf16>,
    %c0_23 = arith.constant 0 : index
    %c0_24 = arith.constant 0 : index
    %53 = vector.load %arg9[%c0_23, %c0_24] : memref<16x256xbf16, #tpu.memory_space<vmem>>, vector<16x256xbf16>
    %c0_25 = arith.constant 0 : index
    %c0_26 = arith.constant 0 : index
    %54 = vector.load %arg4[%c0_25, %c0_26] : memref<256x16xbf16, #tpu.memory_space<vmem>>, vector<256x16xbf16>
    %cst_27 = arith.constant dense<0.000000e+00> : vector<16x16xf32>
    %55 = tpu.matmul %53, %54, %cst_27 {dimension_numbers = #tpu.dot_dimension_numbers<[1], [0], [0], [1], [0, 0, 1, 1], [], []>} : vector<16x256xbf16>, vector<256x16xbf16>, vector<16x16xf32> -> vector<16x16xf32>
    %56 = vector.extract_strided_slice %55 {offsets = [3, 0], sizes = [8, 4], strides = [1, 1]} : vector<16x16xf32> to vector<8x4xf32>
    %57 = vector.extract_strided_slice %55 {offsets = [2, 4], sizes = [8, 4], strides = [1, 1]} : vector<16x16xf32> to vector<8x4xf32>
    %58 = arith.addf %56, %57 : vector<8x4xf32>
    %59 = vector.extract_strided_slice %55 {offsets = [1, 8], sizes = [8, 4], strides = [1, 1]} : vector<16x16xf32> to vector<8x4xf32>
    %60 = arith.addf %58, %59 : vector<8x4xf32>
    %61 = vector.extract_strided_slice %55 {offsets = [0, 12], sizes = [8, 4], strides = [1, 1]} : vector<16x16xf32> to vector<8x4xf32>
    %62 = arith.addf %60, %61 : vector<8x4xf32>
    %c0_28 = arith.constant 0 : index
    %c0_29 = arith.constant 0 : index
    %63 = vector.load %arg6[%c0_28, %c0_29] : memref<8x4xf32, #tpu.memory_space<vmem>>, vector<8x4xf32>
    %64 = arith.mulf %62, %63 : vector<8x4xf32>
    %c0_30 = arith.constant 0 : index
    %c0_31 = arith.constant 0 : index
    %c0_32 = arith.constant 0 : index
    %65 = vector.load %arg7[%c0_30, %c0_31, %c0_32] : memref<1x8x4xf32, #tpu.memory_space<vmem>>, vector<1x8x4xf32>
    %66 = vector.shape_cast %65 : vector<1x8x4xf32> to vector<8x4xf32>
    %67 = vector.shape_cast %64 : vector<8x4xf32> to vector<1x8x4xf32>
    tpu.vector_store %arg7[%c0_30, %c0_31, %c0_32], %67 {strides = array<i32>} : memref<1x8x4xf32, #tpu.memory_space<vmem>>, vector<1x8x4xf32>,
    return
  }
  func.func @transform_0(%arg0: i32, %arg1: i32) -> (i32, i32, i32, i32) {
    %c0_i32 = arith.constant 0 : i32
    %c0_i32_0 = arith.constant 0 : i32
    %c0_i32_1 = arith.constant 0 : i32
    return %arg0, %arg1, %c0_i32, %c0_i32_0 : i32, i32, i32, i32
  }
  func.func @transform_1(%arg0: i32, %arg1: i32) -> (i32, i32) {
    %c0_i32 = arith.constant 0 : i32
    %c0_i32_0 = arith.constant 0 : i32
    %c0_i32_1 = arith.constant 0 : i32
    return %c0_i32, %c0_i32_0 : i32, i32
  }
  func.func @transform_2(%arg0: i32, %arg1: i32) -> (i32, i32) {
    %c0_i32 = arith.constant 0 : i32
    %c0_i32_0 = arith.constant 0 : i32
    %c0_i32_1 = arith.constant 0 : i32
    return %c0_i32, %c0_i32_0 : i32, i32
  }
  func.func @transform_3(%arg0: i32, %arg1: i32) -> (i32, i32) {
    %c0_i32 = arith.constant 0 : i32
    %c0_i32_0 = arith.constant 0 : i32
    %c0_i32_1 = arith.constant 0 : i32
    return %c0_i32, %c0_i32_0 : i32, i32
  }
  func.func @transform_4(%arg0: i32, %arg1: i32) -> (i32, i32) {
    %c0_i32 = arith.constant 0 : i32
    %c0_i32_0 = arith.constant 0 : i32
    return %arg1, %c0_i32 : i32, i32
  }
  func.func @transform_5(%arg0: i32, %arg1: i32) -> (i32, i32, i32) {
    %c0_i32 = arith.constant 0 : i32
    %c0_i32_0 = arith.constant 0 : i32
    return %arg0, %arg1, %c0_i32 : i32, i32, i32
  }
}

</mosaic_0001>

<llo_original>
// kernel: tpu_custom_call.1
$region0: #{tpu_custom_call.1}
  #allocation0 [shape = 'u32[]', space=smem, size = 0x4, offset = 0x4, fixed_abs, tag = 'smem constant byte address 0x4 - core index']
  #allocation1 [shape = 'u32[144,128]{1,0:T(1,128)}', space=vmem, size = 0x12000, scoped, tag = 'internal scratch']
  #allocation2 [shape = 'f32[16,16]{1,0:T(8,128)}', space=vmem, size = 0x2000, scoped, tag = 'scratch operand']
  #allocation3 [shape = 'bf16[16,256]{1,0:T(16,128)(2,1)}', space=vmem, size = 0x2000, scoped, tag = 'scratch operand']
  %s0 = inlined_call_operand.vmem [shape: f32[2,3,14,4], index: 0, kind: input, shape index: {}]
  %s1 = inlined_call_operand.vmem [shape: bf16[16,256], index: 1, kind: input, shape index: {}]
  %s2 = inlined_call_operand.vmem [shape: bf16[256,16], index: 2, kind: input, shape index: {}]
  %s3 = inlined_call_operand.vmem [shape: f32[1,128], index: 3, kind: input, shape index: {}]
  %s4 = inlined_call_operand.vmem [shape: f32[24,4], index: 4, kind: input, shape index: {}]
  %s5 = inlined_call_operand.vmem [shape: f32[2,24,4], index: 5, kind: output, shape index: {}]
  %s6 = sld [smem:[#allocation0]]
  $region53: #{tpu_custom_call.1} parent=0
    _
  %s8 = ssub.s32 1, %s6
  %s9 = scalar_select 0, %s8, %s6
  loop: start=0, step=1, limit=8
  $region2: #{tpu_custom_call.1} parent=0 // loop_pre_header
    _
  $region3: #{tpu_custom_call.1} parent=0 // loop_header
    %s11 = sphi 0, %s15
    %p12 = scmp.ge.s32.totalorder %s11, 8
    %s18 = sphi 0, %s30
    %s19 = sphi 0, %s26
    %s20 = sphi 0, %s18
    %s21 = sphi 0, %s19
    %s22 = sphi 0, %s20
    %s23 = sphi 0, %s21
    %s35 = sphi 0, %s37
    %s38 = sphi 0, %s35
    %s39 = sphi 0, %s38
    %s55 = sphi 0, %s39
    %s59 = sphi 0, %s59
    %s61 = sphi 0, %s59
    %s62 = sphi 0, %s61
    %s76 = sphi 0, %s62
    %s80 = sphi 0, %s80
    %s82 = sphi 0, %s80
    %s83 = sphi 0, %s82
    %s97 = sphi 0, %s83
    %s101 = sphi 0, %s101
    %s103 = sphi 0, %s101
    %s104 = sphi 0, %s103
    %s118 = sphi 0, %s104
    %s124 = sphi 0, %s126
    %s127 = sphi 0, %s124
    %s128 = sphi 0, %s127
    %s144 = sphi 0, %s128
    %s152 = sphi 0, %s154
    %s155 = sphi 0, %s152
    %s156 = sphi 0, %s155
    %s172 = sphi 0, %s156
  $region4: #{tpu_custom_call.1} parent=0 // loop_header_branch
    %14 = sbr.rel (%p12) target = $region8
  $region5: #{tpu_custom_call.1} parent=0 // loop_body
    %s16 = ssub.s32 %s11, 1
    %s17 = ssub.s32 %s11, 2
    %s24 = sadd.s32 1, %s19
    %p25 = scmp.ge.s32.totalorder %s24, 3
    %s26 = scalar_select %p25, 0, %s24
    %s27 = sadd.s32 1, %s18
    %s28 = scalar_select %p25, %s27, %s18
    %p29 = scmp.ge.s32.totalorder %s28, 2
    %s30 = scalar_select %p29, 0, %s28
    %s31 = ssub.s32 %s18, %s30
    %s32 = ssub.s32 %s19, %s26
    %s33 = sor.u32 %s31, %s32
    %p34 = scmp.eq.s32.totalorder %s33, 0
    %s36 = sadd.s32 %s35, 1
    %s37 = scalar_select %p34, %s35, %s36
    %p40 = pneg %p34
    %p41 = scmp.eq.s32.totalorder %s11, 5
    %p42 = por %p40, %p41
    %p43 = scmp.ne.s32.totalorder %s35, %s38
    %p44 = scmp.eq.s32.totalorder %s11, 0
    %p45 = por %p43, %p44
    %p46 = scmp.ne.s32.totalorder %s35, %s38
    %p47 = scmp.eq.s32.totalorder %s16, 5
    %p48 = por %p46, %p47
    %p49 = scmp.ne.s32.totalorder %s38, %s39
    %p50 = scmp.eq.s32.totalorder %s16, 0
    %p51 = por %p49, %p50
    %p52 = scmp.ne.s32.totalorder %s38, %s39
    %p53 = scmp.eq.s32.totalorder %s17, 5
    %p54 = por %p52, %p53
    %p56 = scmp.ne.s32.totalorder %s39, %s55
    %p57 = scmp.eq.s32.totalorder %s17, 0
    %p58 = por %p56, %p57
    %s60 = sadd.s32 %s59, 1
    %p63 = scmp.eq.s32.totalorder %s11, 5
    %p64 = scmp.ne.s32.totalorder %s59, %s61
    %p65 = scmp.eq.s32.totalorder %s11, 0
    %p66 = por %p64, %p65
    %p67 = scmp.ne.s32.totalorder %s59, %s61
    %p68 = scmp.eq.s32.totalorder %s16, 5
    %p69 = por %p67, %p68
    %p70 = scmp.ne.s32.totalorder %s61, %s62
    %p71 = scmp.eq.s32.totalorder %s16, 0
    %p72 = por %p70, %p71
    %p73 = scmp.ne.s32.totalorder %s61, %s62
    %p74 = scmp.eq.s32.totalorder %s17, 5
    %p75 = por %p73, %p74
    %p77 = scmp.ne.s32.totalorder %s62, %s76
    %p78 = scmp.eq.s32.totalorder %s17, 0
    %p79 = por %p77, %p78
    %s81 = sadd.s32 %s80, 1
    %p84 = scmp.eq.s32.totalorder %s11, 5
    %p85 = scmp.ne.s32.totalorder %s80, %s82
    %p86 = scmp.eq.s32.totalorder %s11, 0
    %p87 = por %p85, %p86
    %p88 = scmp.ne.s32.totalorder %s80, %s82
    %p89 = scmp.eq.s32.totalorder %s16, 5
    %p90 = por %p88, %p89
    %p91 = scmp.ne.s32.totalorder %s82, %s83
    %p92 = scmp.eq.s32.totalorder %s16, 0
    %p93 = por %p91, %p92
    %p94 = scmp.ne.s32.totalorder %s82, %s83
    %p95 = scmp.eq.s32.totalorder %s17, 5
    %p96 = por %p94, %p95
    %p98 = scmp.ne.s32.totalorder %s83, %s97
    %p99 = scmp.eq.s32.totalorder %s17, 0
    %p100 = por %p98, %p99
    %s102 = sadd.s32 %s101, 1
    %p105 = scmp.eq.s32.totalorder %s11, 5
    %p106 = scmp.ne.s32.totalorder %s101, %s103
    %p107 = scmp.eq.s32.totalorder %s11, 0
    %p108 = por %p106, %p107
    %p109 = scmp.ne.s32.totalorder %s101, %s103
    %p110 = scmp.eq.s32.totalorder %s16, 5
    %p111 = por %p109, %p110
    %p112 = scmp.ne.s32.totalorder %s103, %s104
    %p113 = scmp.eq.s32.totalorder %s16, 0
    %p114 = por %p112, %p113
    %p115 = scmp.ne.s32.totalorder %s103, %s104
    %p116 = scmp.eq.s32.totalorder %s17, 5
    %p117 = por %p115, %p116
    %p119 = scmp.ne.s32.totalorder %s104, %s118
    %p120 = scmp.eq.s32.totalorder %s17, 0
    %p121 = por %p119, %p120
    %s122 = ssub.s32 %s19, %s26
    %p123 = scmp.eq.s32.totalorder %s122, 0
    %s125 = sadd.s32 %s124, 1
    %s126 = scalar_select %p123, %s124, %s125
    %p129 = pneg %p123
    %p130 = scmp.eq.s32.totalorder %s11, 5
    %p131 = por %p129, %p130
    %p132 = scmp.ne.s32.totalorder %s124, %s127
    %p133 = scmp.eq.s32.totalorder %s11, 0
    %p134 = por %p132, %p133
    %p135 = scmp.ne.s32.totalorder %s124, %s127
    %p136 = scmp.eq.s32.totalorder %s16, 5
    %p137 = por %p135, %p136
    %p138 = scmp.ne.s32.totalorder %s127, %s128
    %p139 = scmp.eq.s32.totalorder %s16, 0
    %p140 = por %p138, %p139
    %p141 = scmp.ne.s32.totalorder %s127, %s128
    %p142 = scmp.eq.s32.totalorder %s17, 5
    %p143 = por %p141, %p142
    %p145 = scmp.ne.s32.totalorder %s128, %s144
    %p146 = scmp.eq.s32.totalorder %s17, 0
    %p147 = por %p145, %p146
    %s148 = ssub.s32 %s18, %s30
    %s149 = ssub.s32 %s19, %s26
    %s150 = sor.u32 %s148, %s149
    %p151 = scmp.eq.s32.totalorder %s150, 0
    %s153 = sadd.s32 %s152, 1
    %s154 = scalar_select %p151, %s152, %s153
    %p157 = pneg %p151
    %p158 = scmp.eq.s32.totalorder %s11, 5
    %p159 = por %p157, %p158
    %p160 = scmp.ne.s32.totalorder %s152, %s155
    %p161 = scmp.eq.s32.totalorder %s11, 0
    %p162 = por %p160, %p161
    %p163 = scmp.ne.s32.totalorder %s152, %s155
    %p164 = scmp.eq.s32.totalorder %s16, 5
    %p165 = por %p163, %p164
    %p166 = scmp.ne.s32.totalorder %s155, %s156
    %p167 = scmp.eq.s32.totalorder %s16, 0
    %p168 = por %p166, %p167
    %p169 = scmp.ne.s32.totalorder %s155, %s156
    %p170 = scmp.eq.s32.totalorder %s17, 5
    %p171 = por %p169, %p170
    %p173 = scmp.ne.s32.totalorder %s156, %s172
    %p174 = scmp.eq.s32.totalorder %s17, 0
    %p175 = por %p173, %p174
    %p176 = scmp.le.s32.totalorder 1, %s11
    %p177 = scmp.lt.s32.totalorder %s11, 7
    %p178 = pnand %p176, %p177
    %p179 = pneg %p178
    // Predicated region
    $region9: #{tpu_custom_call.1} parent=5 // pred_check
      _
    $region10: #{tpu_custom_call.1} parent=5 // pred_check_branch
      %181 = sbr.rel (%p178) target = $region12
    $region11: #{tpu_custom_call.1} parent=5 // pred_region
      %s182 = ssub.s32 %s11, 1
      // Predicated region
      $region13: #{tpu_custom_call.1} parent=11 // pred_check
        %p183 = pneg %p72
      $region14: #{tpu_custom_call.1} parent=11 // pred_check_branch
        %185 = sbr.rel (%p183) target = $region16
      $region15: #{tpu_custom_call.1} parent=11 // pred_region
        _
      $region16: #{tpu_custom_call.1} parent=11 // pred_fallthru
        _
      // Predicated region
      $region17: #{tpu_custom_call.1} parent=11 // pred_check
        %p186 = pneg %p93
      $region18: #{tpu_custom_call.1} parent=11 // pred_check_branch
        %188 = sbr.rel (%p186) target = $region20
      $region19: #{tpu_custom_call.1} parent=11 // pred_region
        _
      $region20: #{tpu_custom_call.1} parent=11 // pred_fallthru
        _
      // Predicated region
      $region21: #{tpu_custom_call.1} parent=11 // pred_check
        %p189 = pneg %p114
      $region22: #{tpu_custom_call.1} parent=11 // pred_check_branch
        %191 = sbr.rel (%p189) target = $region24
      $region23: #{tpu_custom_call.1} parent=11 // pred_region
        _
      $region24: #{tpu_custom_call.1} parent=11 // pred_fallthru
        _
    $region12: #{tpu_custom_call.1} parent=5 // pred_fallthru
      _
    %p192 = scmp.lt.s32.totalorder %s11, 6
    // Predicated region
    $region25: #{tpu_custom_call.1} parent=5 // pred_check
      %p193 = pneg %p192
    $region26: #{tpu_custom_call.1} parent=5 // pred_check_branch
      %195 = sbr.rel (%p193) target = $region28
    $region27: #{tpu_custom_call.1} parent=5 // pred_region
      // Predicated region
      $region29: #{tpu_custom_call.1} parent=27 // pred_check
        %p196 = pneg %p45
      $region30: #{tpu_custom_call.1} parent=27 // pred_check_branch
        %198 = sbr.rel (%p196) target = $region32
      $region31: #{tpu_custom_call.1} parent=27 // pred_region
        %p199 = scmp.lt.s32.totalorder %s18, 1
        %s200 = scalar_select %p199, %s18, 1
        %p201 = scmp.lt.s32.totalorder %s19, 2
        %s202 = scalar_select %p201, %s19, 2
        %s203 = smul.addr %s202, 2
        %s204 = smul.addr %s200, 6
        %s205 = sadd.s32 %s203, %s204
        %s206 = smul.addr %s205, 8
        %s207 = scalar_lea.vmem %s0, %s206
      $region32: #{tpu_custom_call.1} parent=27 // pred_fallthru
        _
      // Predicated region
      $region33: #{tpu_custom_call.1} parent=27 // pred_check
        %p208 = pneg %p134
      $region34: #{tpu_custom_call.1} parent=27 // pred_check_branch
        %210 = sbr.rel (%p208) target = $region36
      $region35: #{tpu_custom_call.1} parent=27 // pred_region
        %p211 = scmp.lt.s32.totalorder %s19, 2
        %s212 = scalar_select %p211, %s19, 2
        %s213 = smul.addr %s212, 8
        %s214 = scalar_lea.vmem %s4, %s213
      $region36: #{tpu_custom_call.1} parent=27 // pred_fallthru
        _
    $region28: #{tpu_custom_call.1} parent=5 // pred_fallthru
      _
    %p215 = scmp.le.s32.totalorder 1, %s11
    %p216 = scmp.lt.s32.totalorder %s11, 7
    %p217 = pnand %p215, %p216
    %p218 = pneg %p217
    // Predicated region
    $region37: #{tpu_custom_call.1} parent=5 // pred_check
      _
    $region38: #{tpu_custom_call.1} parent=5 // pred_check_branch
      %220 = sbr.rel (%p217) target = $region40
    $region39: #{tpu_custom_call.1} parent=5 // pred_region
      %s221 = ssub.s32 %s11, 1
      %p222 = scmp.lt.s32.totalorder %s20, 1
      %s223 = scalar_select %p222, %s20, 1
      %p224 = scmp.lt.s32.totalorder %s21, 2
      %s225 = scalar_select %p224, %s21, 2
      %s226 = smul.addr %s225, 2
      %s227 = smul.addr %s223, 6
      %s228 = sadd.s32 %s226, %s227
      %s229 = smul.addr %s228, 8
      %s230 = scalar_lea.vmem %s0, %s229
      %p231 = pneg %p51
      %p232 = pneg %p48
      %p233 = pneg %p72
      %p234 = pneg %p69
      %p235 = pneg %p93
      %p236 = pneg %p90
      %p237 = pneg %p114
      %p238 = pneg %p111
      %p239 = scmp.lt.s32.totalorder %s21, 2
      %s240 = scalar_select %p239, %s21, 2
      %s241 = smul.addr %s240, 8
      %s242 = scalar_lea.vmem %s4, %s241
      %p243 = pneg %p140
      %p244 = pneg %p137
      %p245 = pneg %p168
      %p246 = pneg %p165
      %p247 = scmp.lt.s32.totalorder %s20, 1
      %s248 = scalar_select %p247, %s20, 1
      %p249 = scmp.lt.s32.totalorder %s21, 2
      %s250 = scalar_select %p249, %s21, 2
      %s251 = smul.addr %s248, 3
      %s252 = sadd.s32 %s250, %s251
      %s253 = smul.addr %s252, 8
      %s254 = scalar_lea.vmem %s5, %s253
      %p255 = scmp.lt.s32.totalorder %s20, 1
      %s256 = scalar_select %p255, %s20, 1
      %p257 = scmp.lt.s32.totalorder %s21, 2
      %s258 = scalar_select %p257, %s21, 2
      %s259 = smul.addr %s258, 2
      %s260 = smul.addr %s256, 6
      %s261 = sadd.s32 %s259, %s260
      %s262 = smul.addr %s261, 8
      %s263 = scalar_lea.vmem %s0, %s262
      %p264 = scmp.lt.s32.totalorder %s21, 2
      %s265 = scalar_select %p264, %s21, 2
      %s266 = smul.addr %s265, 8
      %s267 = scalar_lea.vmem %s4, %s266
      %p268 = scmp.lt.s32.totalorder %s20, 1
      %s269 = scalar_select %p268, %s20, 1
      %p270 = scmp.lt.s32.totalorder %s21, 2
      %s271 = scalar_select %p270, %s21, 2
      %s272 = smul.addr %s269, 3
      %s273 = sadd.s32 %s271, %s272
      %s274 = smul.addr %s273, 8
      %s275 = scalar_lea.vmem %s5, %s274
      %v277 = vld [vmem:[%s263] sm:$0xff]
      %v278 = vld [vmem:[%s263 + $0x8] sm:$0x3f]
      %vm279 = vcmask 31744
      %280 = vst.msk [vmem:[#allocation2] sm:$0xff] %vm279, %v277
      %vm281 = vcmask 26624
      %282 = vst.msk [vmem:[#allocation2 + $0x8] sm:$0x7] %vm281, %v278
      %285 = vrot.lane.b32.xlu0 %v277, 4
      %v286 = vpop.permute.xlu0 %285
      %287 = vrot.lane.b32.xlu0 %v278, 4
      %v288 = vpop.permute.xlu0 %287
      %vm291 = vcmask 64545
      %292 = vst.msk [vmem:[#allocation2 - $0x1] sm:$0xfe] %vm291, %v286
      %vm293 = vcmask 60448
      %294 = vst.msk [vmem:[#allocation2 + $0x7] sm:$0xf] %vm293, %v288
      %295 = vrot.lane.b32.xlu0 %v277, 8
      %v296 = vpop.permute.xlu0 %295
      %297 = vrot.lane.b32.xlu0 %v278, 8
      %v298 = vpop.permute.xlu0 %297
      %vm301 = vcmask 97346
      %302 = vst.msk [vmem:[#allocation2 - $0x2] sm:$0xfc] %vm301, %v296
      %vm303 = vcmask 94272
      %304 = vst.msk [vmem:[#allocation2 + $0x6] sm:$0x1f] %vm303, %v298
      %305 = vrot.lane.b32.xlu0 %v277, 12
      %v306 = vpop.permute.xlu0 %305
      %307 = vrot.lane.b32.xlu0 %v278, 12
      %v308 = vpop.permute.xlu0 %307
      %vm311 = vcmask 130147
      %312 = vst.msk [vmem:[#allocation2 - $0x3] sm:$0xf8] %vm311, %v306
      %vm313 = vcmask 128096
      %314 = vst.msk [vmem:[#allocation2 + $0x5] sm:$0x3f] %vm313, %v308
      %vm315 = vcmask 126976
      %316 = vst.msk [vmem:[#allocation2 + $0xb] sm:$0x1f] %vm315, 0.0
      %v317 = vld [vmem:[#allocation2] sm:$0xff]
      %v318 = vld [vmem:[#allocation2 + $0x8] sm:$0xff]
      %v319 = vpack.c.bf16 %v318, %v317
      %v320 = vld [vmem:[%s1] sm:$0xff]
      %v321 = vld [vmem:[%s1 + $0x8] sm:$0xff]
      %v324 = vunpack.c.l.b16 %v320
      %v325 = vunpack.c.h.b16 %v320
      %v326 = vunpack.c.l.b16 %v321
      %v327 = vunpack.c.h.b16 %v321
      %v328 = vpack.c.b16 %v326, %v324
      %v329 = vpack.c.b16 %v327, %v325
      %vm332 = vcmask 130048
      %v334 = vsel %vm332, %v319, 0
      %336 = vmatprep.subr.bf16.mxu0 %v329
      %337 = vmatpush1.bf16.msra.mxu0 %v328
      %338 = vmatprep.subr.bf16.mxu0 0
      %339 = vmatpush1.bf16.msra.mxu0 0
      %340 = vmatprep.subr.bf16.mxu0 0
      %341 = vmatpush1.bf16.msra.mxu0 0
      %342 = vmatprep.subr.bf16.mxu0 0
      %343 = vmatpush1.bf16.msra.mxu0 0
      %344 = vmatprep.subr.bf16.mxu0 0
      %345 = vmatpush1.bf16.msra.mxu0 0
      %346 = vmatprep.subr.bf16.mxu0 0
      %347 = vmatpush1.bf16.msra.mxu0 0
      %348 = vmatprep.subr.bf16.mxu0 0
      %349 = vmatpush1.bf16.msra.mxu0 0
      %350 = vmatprep.subr.bf16.mxu0 0
      %351 = vmatpush1.bf16.msra.mxu0 0
      %352 = vmatprep.subr.bf16.mxu0 0
      %353 = vmatpush1.bf16.msra.mxu0 0
      %354 = vmatprep.subr.bf16.mxu0 0
      %355 = vmatpush1.bf16.msra.mxu0 0
      %356 = vmatprep.subr.bf16.mxu0 0
      %357 = vmatpush1.bf16.msra.mxu0 0
      %358 = vmatprep.subr.bf16.mxu0 0
      %359 = vmatpush1.bf16.msra.mxu0 0
      %360 = vmatprep.subr.bf16.mxu0 0
      %361 = vmatpush1.bf16.msra.mxu0 0
      %362 = vmatprep.subr.bf16.mxu0 0
      %363 = vmatpush1.bf16.msra.mxu0 0
      %364 = vmatprep.subr.bf16.mxu0 0
      %365 = vmatpush1.bf16.msra.mxu0 0
      %366 = vmatprep.subr.bf16.mxu0 0
      %367 = vmatpush1.bf16.msra.mxu0 0
      %368 = vmatprep.mubr.bf16.mxu0 0
      %369 = vmatmul.mubr.bf16.gmra.mrb[0].mxu0 %v334
      %v370 = vpop.f32.mrb[0].mxu0
      %v371 = vadd.f32 0.0, %v370
      %v372 = vpop.f32.mrb[0].mxu0
      %v373 = vadd.f32 0.0, %v372
      %v374 = vpop.f32.mrb[0].mxu0
      %v375 = vadd.f32 0.0, %v374
      %v376 = vpop.f32.mrb[0].mxu0
      %v377 = vadd.f32 0.0, %v376
      %378 = vdwg.mxu0
      %v379 = vmul.f32 %v371, %v371
      %v380 = vmul.f32 %v375, %v375
      %v381 = vmul.f32 %v373, %v373
      %v382 = vmul.f32 %v377, %v377
      %v383 = vadd.f32 %v379, %v381
      %v384 = vadd.f32 %v380, %v382
      %vm385 = vcmp.gt.f32.partialorder %v383, 0.0
      %vm386 = vcmp.gt.f32.partialorder %v384, 0.0
      %v387 = vrsqrt.pop %v383
      %v388 = vrsqrt.pop %v384
      %v389 = vsel %vm385, %v387, 0.0
      %v390 = vsel %vm386, %v388, 0.0
      %v391 = vld [vmem:[%s3] sm:$0x1]
      %v393 = vlaneseq
      %v394 = vshrl.u32 %v393, 7
      %v395 = vsub.s32 0, %v394
      %v396 = vrot.slane %v391, %v395
      %v398 = vmul.f32 %v396, %v389
      %v399 = vmul.f32 %v396, %v390
      %v400 = vsub.f32 1.0, %v398
      %v401 = vsub.f32 1.0, %v399
      %v402 = vmax.f32 %v400, 0.0
      %v403 = vmax.f32 %v401, 0.0
      %v404 = vlaneseq
      %v405 = vshrl.u32 %v404, 7
      %v406 = vadd.s32 %v405, 8
      %s407 = smul.u32 %s21, 8
      %s408 = ssub.s32 %s407, 3
      %v409 = vstv %s408
      %v410 = vadd.s32 %v405, %v409
      %v411 = vadd.s32 %v406, %v409
      %vm412 = vcmp.ge.s32.totalorder %v410, 0
      %vm413 = vcmp.ge.s32.totalorder %v411, 0
      %vm414 = vcmp.lt.s32.totalorder %v410, 17
      %vm415 = vcmp.lt.s32.totalorder %v411, 17
      %vm416 = vmand %vm412, %vm414
      %vm417 = vmand %vm413, %vm415
      %v418 = vsel %vm416, 1, 0
      %v419 = vsel %vm417, 1, 0
      %v420 = vcvt.s32.f32 %v418
      %v421 = vcvt.s32.f32 %v419
      %v422 = vmul.f32 %v402, %v420
      %v423 = vmul.f32 %v403, %v421
      %v424 = vmul.f32 %v371, %v422
      %v425 = vmul.f32 %v375, %v423
      %v426 = vpack.c.bf16 %v425, %v424
      %427 = vst [vmem:[#allocation3] sm:$0xff] %v426
      %v428 = vmul.f32 %v373, %v422
      %v429 = vmul.f32 %v377, %v423
      %v430 = vpack.c.bf16 %v429, %v428
      %431 = vst [vmem:[#allocation3 + $0x8] sm:$0xff] %v430
      %v432 = vld [vmem:[#allocation3] sm:$0xff]
      %v433 = vld [vmem:[#allocation3 + $0x8] sm:$0xff]
      %v434 = vld [vmem:[%s2] sm:$0xf]
      %v435 = vld [vmem:[%s2 + $0x4] sm:$0xf]
      %v436 = vld [vmem:[%s2 + $0x8] sm:$0xf]
      %v437 = vld [vmem:[%s2 + $0xc] sm:$0xf]
      %v438 = vld [vmem:[%s2 + $0x10] sm:$0xf]
      %v439 = vld [vmem:[%s2 + $0x14] sm:$0xf]
      %v440 = vld [vmem:[%s2 + $0x18] sm:$0xf]
      %v441 = vld [vmem:[%s2 + $0x1c] sm:$0xf]
      %v442 = vld [vmem:[%s2 + $0x20] sm:$0xf]
      %v443 = vld [vmem:[%s2 + $0x24] sm:$0xf]
      %v444 = vld [vmem:[%s2 + $0x28] sm:$0xf]
      %v445 = vld [vmem:[%s2 + $0x2c] sm:$0xf]
      %v446 = vld [vmem:[%s2 + $0x30] sm:$0xf]
      %v447 = vld [vmem:[%s2 + $0x34] sm:$0xf]
      %v448 = vld [vmem:[%s2 + $0x38] sm:$0xf]
      %v449 = vld [vmem:[%s2 + $0x3c] sm:$0xf]
      %v450 = vld [vmem:[%s2 + $0x40] sm:$0xf]
      %v451 = vld [vmem:[%s2 + $0x44] sm:$0xf]
      %v452 = vld [vmem:[%s2 + $0x48] sm:$0xf]
      %v453 = vld [vmem:[%s2 + $0x4c] sm:$0xf]
      %v454 = vld [vmem:[%s2 + $0x50] sm:$0xf]
      %v455 = vld [vmem:[%s2 + $0x54] sm:$0xf]
      %v456 = vld [vmem:[%s2 + $0x58] sm:$0xf]
      %v457 = vld [vmem:[%s2 + $0x5c] sm:$0xf]
      %v458 = vld [vmem:[%s2 + $0x60] sm:$0xf]
      %v459 = vld [vmem:[%s2 + $0x64] sm:$0xf]
      %v460 = vld [vmem:[%s2 + $0x68] sm:$0xf]
      %v461 = vld [vmem:[%s2 + $0x6c] sm:$0xf]
      %v462 = vld [vmem:[%s2 + $0x70] sm:$0xf]
      %v463 = vld [vmem:[%s2 + $0x74] sm:$0xf]
      %v464 = vld [vmem:[%s2 + $0x78] sm:$0xf]
      %v465 = vld [vmem:[%s2 + $0x7c] sm:$0xf]
      %v498 = vunpack.c.l.b16 %v434
      %v499 = vunpack.c.l.b16 %v435
      %v500 = vunpack.c.l.b16 %v436
      %v501 = vunpack.c.l.b16 %v437
      %v502 = vunpack.c.l.b16 %v438
      %v503 = vunpack.c.l.b16 %v439
      %v504 = vunpack.c.l.b16 %v440
      %v505 = vunpack.c.l.b16 %v441
      %v506 = vunpack.c.l.b16 %v442
      %v507 = vunpack.c.l.b16 %v443
      %v508 = vunpack.c.l.b16 %v444
      %v509 = vunpack.c.l.b16 %v445
      %v510 = vunpack.c.l.b16 %v446
      %v511 = vunpack.c.l.b16 %v447
      %v512 = vunpack.c.l.b16 %v448
      %v513 = vunpack.c.l.b16 %v449
      %v514 = vunpack.c.l.b16 %v450
      %v515 = vunpack.c.l.b16 %v451
      %v516 = vunpack.c.l.b16 %v452
      %v517 = vunpack.c.l.b16 %v453
      %v518 = vunpack.c.l.b16 %v454
      %v519 = vunpack.c.l.b16 %v455
      %v520 = vunpack.c.l.b16 %v456
      %v521 = vunpack.c.l.b16 %v457
      %v522 = vunpack.c.l.b16 %v458
      %v523 = vunpack.c.l.b16 %v459
      %v524 = vunpack.c.l.b16 %v460
      %v525 = vunpack.c.l.b16 %v461
      %v526 = vunpack.c.l.b16 %v462
      %v527 = vunpack.c.l.b16 %v463
      %v528 = vunpack.c.l.b16 %v464
      %v529 = vunpack.c.l.b16 %v465
      %v530 = vpack.c.b16 %v499, %v498
      %v531 = vpack.c.b16 %v501, %v500
      %v532 = vpack.c.b16 %v503, %v502
      %v533 = vpack.c.b16 %v505, %v504
      %v534 = vpack.c.b16 %v507, %v506
      %v535 = vpack.c.b16 %v509, %v508
      %v536 = vpack.c.b16 %v511, %v510
      %v537 = vpack.c.b16 %v513, %v512
      %v538 = vpack.c.b16 %v515, %v514
      %v539 = vpack.c.b16 %v517, %v516
      %v540 = vpack.c.b16 %v519, %v518
      %v541 = vpack.c.b16 %v521, %v520
      %v542 = vpack.c.b16 %v523, %v522
      %v543 = vpack.c.b16 %v525, %v524
      %v544 = vpack.c.b16 %v527, %v526
      %v545 = vpack.c.b16 %v529, %v528
      %562 = vmatprep.subr.bf16.mxu0 0
      %563 = vmatpush1.bf16.msra.mxu0 %v530
      %564 = vmatprep.subr.bf16.mxu0 0
      %565 = vmatpush1.bf16.msra.mxu0 %v531
      %566 = vmatprep.subr.bf16.mxu0 0
      %567 = vmatpush1.bf16.msra.mxu0 %v532
      %568 = vmatprep.subr.bf16.mxu0 0
      %569 = vmatpush1.bf16.msra.mxu0 %v533
      %570 = vmatprep.subr.bf16.mxu0 0
      %571 = vmatpush1.bf16.msra.mxu0 %v534
      %572 = vmatprep.subr.bf16.mxu0 0
      %573 = vmatpush1.bf16.msra.mxu0 %v535
      %574 = vmatprep.subr.bf16.mxu0 0
      %575 = vmatpush1.bf16.msra.mxu0 %v536
      %576 = vmatprep.subr.bf16.mxu0 0
      %577 = vmatpush1.bf16.msra.mxu0 %v537
      %578 = vmatprep.subr.bf16.mxu0 0
      %579 = vmatpush1.bf16.msra.mxu0 %v538
      %580 = vmatprep.subr.bf16.mxu0 0
      %581 = vmatpush1.bf16.msra.mxu0 %v539
      %582 = vmatprep.subr.bf16.mxu0 0
      %583 = vmatpush1.bf16.msra.mxu0 %v540
      %584 = vmatprep.subr.bf16.mxu0 0
      %585 = vmatpush1.bf16.msra.mxu0 %v541
      %586 = vmatprep.subr.bf16.mxu0 0
      %587 = vmatpush1.bf16.msra.mxu0 %v542
      %588 = vmatprep.subr.bf16.mxu0 0
      %589 = vmatpush1.bf16.msra.mxu0 %v543
      %590 = vmatprep.subr.bf16.mxu0 0
      %591 = vmatpush1.bf16.msra.mxu0 %v544
      %592 = vmatprep.subr.bf16.mxu0 0
      %593 = vmatpush1.bf16.msra.mxu0 %v545
      %594 = vmatprep.mubr.bf16.mxu0 %v433
      %595 = vmatmul.mubr.bf16.gmra.mrb[0].mxu0 %v432
      %v596 = vpop.f32.mrb[0].mxu0
      %v597 = vadd.f32 0.0, %v596
      %v598 = vpop.f32.mrb[0].mxu0
      %v599 = vpop.f32.mrb[0].mxu0
      %v600 = vadd.f32 0.0, %v599
      %v601 = vpop.f32.mrb[0].mxu0
      %602 = vdwg.mxu0
      %vm605 = vcmask 1040384
      %v606 = vrot.slane %v597, 7
      %v607 = vrot.slane %v600, 7
      %v608 = vsel %vm605, %v606, %v607
      %609 = vrot.lane.b32.xlu0 %v606, 124
      %v610 = vpop.permute.xlu0 %609
      %611 = vrot.lane.b32.xlu0 %v608, 124
      %v612 = vpop.permute.xlu0 %611
      %v615 = vadd.f32 %v597, %v610
      %v616 = vadd.f32 %v600, %v612
      %vm617 = vcmask 1041408
      %v618 = vrot.slane %v597, 6
      %v619 = vrot.slane %v600, 6
      %v620 = vsel %vm617, %v618, %v619
      %621 = vrot.lane.b32.xlu0 %v618, 120
      %v622 = vpop.permute.xlu0 %621
      %623 = vrot.lane.b32.xlu0 %v620, 120
      %v624 = vpop.permute.xlu0 %623
      %v627 = vadd.f32 %v615, %v622
      %v628 = vadd.f32 %v616, %v624
      %v629 = vrot.slane %v597, 5
      %630 = vrot.lane.b32.xlu0 %v629, 116
      %v631 = vpop.permute.xlu0 %630
      %v633 = vadd.f32 %v627, %v631
      %v634 = vadd.f32 %v628, %v631
      %v635 = vld [vmem:[%s267] sm:$0xff]
      %v637 = vrot.slane %v635, 5
      %v639 = vmul.f32 %v633, %v637
      %v640 = vmul.f32 %v634, %v637
      %vm641 = vcmask 31747
      %642 = vst.msk [vmem:[%s275 - $0x3] sm:$0xf8] %vm641, %v639
      %643 = vst.msk [vmem:[%s275 + $0x5] sm:$0x7] %vm281, %v640
      %p644 = scmp.lt.s32.totalorder %s20, 1
      %s645 = scalar_select %p644, %s20, 1
      %p646 = scmp.lt.s32.totalorder %s21, 2
      %s647 = scalar_select %p646, %s21, 2
      %s648 = smul.addr %s645, 3
      %s649 = sadd.s32 %s647, %s648
      %s650 = smul.addr %s649, 8
      %s651 = scalar_lea.vmem %s5, %s650
      // Predicated region
      $region41: #{tpu_custom_call.1} parent=39 // pred_check
        %p652 = pneg %p165
      $region42: #{tpu_custom_call.1} parent=39 // pred_check_branch
        %654 = sbr.rel (%p652) target = $region44
      $region43: #{tpu_custom_call.1} parent=39 // pred_region
        _
      $region44: #{tpu_custom_call.1} parent=39 // pred_fallthru
        _
    $region40: #{tpu_custom_call.1} parent=5 // pred_fallthru
      _
    %p655 = scmp.le.s32.totalorder 2, %s11
    // Predicated region
    $region45: #{tpu_custom_call.1} parent=5 // pred_check
      %p656 = pneg %p655
    $region46: #{tpu_custom_call.1} parent=5 // pred_check_branch
      %658 = sbr.rel (%p656) target = $region48
    $region47: #{tpu_custom_call.1} parent=5 // pred_region
      %s659 = ssub.s32 %s11, 2
      // Predicated region
      $region49: #{tpu_custom_call.1} parent=47 // pred_check
        %p660 = pneg %p171
      $region50: #{tpu_custom_call.1} parent=47 // pred_check_branch
        %662 = sbr.rel (%p660) target = $region52
      $region51: #{tpu_custom_call.1} parent=47 // pred_region
        %p663 = scmp.lt.s32.totalorder %s22, 1
        %s664 = scalar_select %p663, %s22, 1
        %p665 = scmp.lt.s32.totalorder %s23, 2
        %s666 = scalar_select %p665, %s23, 2
        %s667 = smul.addr %s664, 3
        %s668 = sadd.s32 %s666, %s667
        %s669 = smul.addr %s668, 8
        %s670 = scalar_lea.vmem %s5, %s669
      $region52: #{tpu_custom_call.1} parent=47 // pred_fallthru
        _
    $region48: #{tpu_custom_call.1} parent=5 // pred_fallthru
      _
  $region6: #{tpu_custom_call.1} parent=0 // loop_footer
    %s15 = sadd.s32 1, %s11
  $region7: #{tpu_custom_call.1} parent=0 // loop_footer_branch
    %10 = sbr.rel target = $region3
  $region8: #{tpu_custom_call.1} parent=0 // loop_exit
    _

// kernel: tpu_custom_call.1
$region0: #{tpu_custom_call.1}
  #allocation0 [shape = 'u32[]', space=smem, size = 0x4, offset = 0x4, fixed_abs, tag = 'smem constant byte address 0x4 - core index']
  #allocation1 [shape = 'u32[144,128]{1,0:T(1,128)}', space=vmem, size = 0x12000, scoped, tag = 'internal scratch']
  #allocation2 [shape = 'f32[16,16]{1,0:T(8,128)}', space=vmem, size = 0x2000, scoped, tag = 'scratch operand']
  #allocation3 [shape = 'bf16[16,256]{1,0:T(16,128)(2,1)}', space=vmem, size = 0x2000, scoped, tag = 'scratch operand']
  %s0 = inlined_call_operand.vmem [shape: f32[2,3,14,4], index: 0, kind: input, shape index: {}]
  %s1 = inlined_call_operand.vmem [shape: bf16[16,256], index: 1, kind: input, shape index: {}]
  %s2 = inlined_call_operand.vmem [shape: bf16[256,16], index: 2, kind: input, shape index: {}]
  %s3 = inlined_call_operand.vmem [shape: f32[1,128], index: 3, kind: input, shape index: {}]
  %s4 = inlined_call_operand.vmem [shape: f32[24,4], index: 4, kind: input, shape index: {}]
  %s5 = inlined_call_operand.vmem [shape: f32[2,24,4], index: 5, kind: output, shape index: {}]
  %s6 = sld [smem:[#allocation0]]
  $region53: #{tpu_custom_call.1} parent=0
    _
  %s8 = ssub.s32 1, %s6
  %s9 = scalar_select 0, %s8, %s6
  loop: start=0, step=1, limit=8
  $region2: #{tpu_custom_call.1} parent=0 // loop_pre_header
    _
  $region3: #{tpu_custom_call.1} parent=0 // loop_header
    %s11 = sphi 0, %s15
    %p12 = scmp.ge.s32.totalorder %s11, 8
    %s18 = sphi 0, %s30
    %s19 = sphi 0, %s26
    %s20 = sphi 0, %s18
    %s21 = sphi 0, %s19
    %s22 = sphi 0, %s20
    %s23 = sphi 0, %s21
    %s35 = sphi 0, %s37
    %s38 = sphi 0, %s35
    %s39 = sphi 0, %s38
    %s55 = sphi 0, %s39
    %s59 = sphi 0, %s59
    %s61 = sphi 0, %s59
    %s62 = sphi 0, %s61
    %s76 = sphi 0, %s62
    %s80 = sphi 0, %s80
    %s82 = sphi 0, %s80
    %s83 = sphi 0, %s82
    %s97 = sphi 0, %s83
    %s101 = sphi 0, %s101
    %s103 = sphi 0, %s101
    %s104 = sphi 0, %s103
    %s118 = sphi 0, %s104
    %s124 = sphi 0, %s126
    %s127 = sphi 0, %s124
    %s128 = sphi 0, %s127
    %s144 = sphi 0, %s128
    %s152 = sphi 0, %s154
    %s155 = sphi 0, %s152
    %s156 = sphi 0, %s155
    %s172 = sphi 0, %s156
  $region4: #{tpu_custom_call.1} parent=0 // loop_header_branch
    %14 = sbr.rel (%p12) target = $region8
  $region5: #{tpu_custom_call.1} parent=0 // loop_body
    %s16 = ssub.s32 %s11, 1
    %s17 = ssub.s32 %s11, 2
    %s24 = sadd.s32 1, %s19
    %p25 = scmp.ge.s32.totalorder %s24, 3
    %s26 = scalar_select %p25, 0, %s24
    %s27 = sadd.s32 1, %s18
    %s28 = scalar_select %p25, %s27, %s18
    %p29 = scmp.ge.s32.totalorder %s28, 2
    %s30 = scalar_select %p29, 0, %s28
    %s31 = ssub.s32 %s18, %s30
    %s32 = ssub.s32 %s19, %s26
    %s33 = sor.u32 %s31, %s32
    %p34 = scmp.eq.s32.totalorder %s33, 0
    %s36 = sadd.s32 %s35, 1
    %s37 = scalar_select %p34, %s35, %s36
    %p40 = pneg %p34
    %p41 = scmp.eq.s32.totalorder %s11, 5
    %p42 = por %p40, %p41
    %p43 = scmp.ne.s32.totalorder %s35, %s38
    %p44 = scmp.eq.s32.totalorder %s11, 0
    %p45 = por %p43, %p44
    %p46 = scmp.ne.s32.totalorder %s35, %s38
    %p47 = scmp.eq.s32.totalorder %s16, 5
    %p48 = por %p46, %p47
    %p49 = scmp.ne.s32.totalorder %s38, %s39
    %p50 = scmp.eq.s32.totalorder %s16, 0
    %p51 = por %p49, %p50
    %p52 = scmp.ne.s32.totalorder %s38, %s39
    %p53 = scmp.eq.s32.totalorder %s17, 5
    %p54 = por %p52, %p53
    %p56 = scmp.ne.s32.totalorder %s39, %s55
    %p57 = scmp.eq.s32.totalorder %s17, 0
    %p58 = por %p56, %p57
    %s60 = sadd.s32 %s59, 1
    %p63 = scmp.eq.s32.totalorder %s11, 5
    %p64 = scmp.ne.s32.totalorder %s59, %s61
    %p65 = scmp.eq.s32.totalorder %s11, 0
    %p66 = por %p64, %p65
    %p67 = scmp.ne.s32.totalorder %s59, %s61
    %p68 = scmp.eq.s32.totalorder %s16, 5
    %p69 = por %p67, %p68
    %p70 = scmp.ne.s32.totalorder %s61, %s62
    %p71 = scmp.eq.s32.totalorder %s16, 0
    %p72 = por %p70, %p71
    %p73 = scmp.ne.s32.totalorder %s61, %s62
    %p74 = scmp.eq.s32.totalorder %s17, 5
    %p75 = por %p73, %p74
    %p77 = scmp.ne.s32.totalorder %s62, %s76
    %p78 = scmp.eq.s32.totalorder %s17, 0
    %p79 = por %p77, %p78
    %s81 = sadd.s32 %s80, 1
    %p84 = scmp.eq.s32.totalorder %s11, 5
    %p85 = scmp.ne.s32.totalorder %s80, %s82
    %p86 = scmp.eq.s32.totalorder %s11, 0
    %p87 = por %p85, %p86
    %p88 = scmp.ne.s32.totalorder %s80, %s82
    %p89 = scmp.eq.s32.totalorder %s16, 5
    %p90 = por %p88, %p89
    %p91 = scmp.ne.s32.totalorder %s82, %s83
    %p92 = scmp.eq.s32.totalorder %s16, 0
    %p93 = por %p91, %p92
    %p94 = scmp.ne.s32.totalorder %s82, %s83
    %p95 = scmp.eq.s32.totalorder %s17, 5
    %p96 = por %p94, %p95
    %p98 = scmp.ne.s32.totalorder %s83, %s97
    %p99 = scmp.eq.s32.totalorder %s17, 0
    %p100 = por %p98, %p99
    %s102 = sadd.s32 %s101, 1
    %p105 = scmp.eq.s32.totalorder %s11, 5
    %p106 = scmp.ne.s32.totalorder %s101, %s103
    %p107 = scmp.eq.s32.totalorder %s11, 0
    %p108 = por %p106, %p107
    %p109 = scmp.ne.s32.totalorder %s101, %s103
    %p110 = scmp.eq.s32.totalorder %s16, 5
    %p111 = por %p109, %p110
    %p112 = scmp.ne.s32.totalorder %s103, %s104
    %p113 = scmp.eq.s32.totalorder %s16, 0
    %p114 = por %p112, %p113
    %p115 = scmp.ne.s32.totalorder %s103, %s104
    %p116 = scmp.eq.s32.totalorder %s17, 5
    %p117 = por %p115, %p116
    %p119 = scmp.ne.s32.totalorder %s104, %s118
    %p120 = scmp.eq.s32.totalorder %s17, 0
    %p121 = por %p119, %p120
    %s122 = ssub.s32 %s19, %s26
    %p123 = scmp.eq.s32.totalorder %s122, 0
    %s125 = sadd.s32 %s124, 1
    %s126 = scalar_select %p123, %s124, %s125
    %p129 = pneg %p123
    %p130 = scmp.eq.s32.totalorder %s11, 5
    %p131 = por %p129, %p130
    %p132 = scmp.ne.s32.totalorder %s124, %s127
    %p133 = scmp.eq.s32.totalorder %s11, 0
    %p134 = por %p132, %p133
    %p135 = scmp.ne.s32.totalorder %s124, %s127
    %p136 = scmp.eq.s32.totalorder %s16, 5
    %p137 = por %p135, %p136
    %p138 = scmp.ne.s32.totalorder %s127, %s128
    %p139 = scmp.eq.s32.totalorder %s16, 0
    %p140 = por %p138, %p139
    %p141 = scmp.ne.s32.totalorder %s127, %s128
    %p142 = scmp.eq.s32.totalorder %s17, 5
    %p143 = por %p141, %p142
    %p145 = scmp.ne.s32.totalorder %s128, %s144
    %p146 = scmp.eq.s32.totalorder %s17, 0
    %p147 = por %p145, %p146
    %s148 = ssub.s32 %s18, %s30
    %s149 = ssub.s32 %s19, %s26
    %s150 = sor.u32 %s148, %s149
    %p151 = scmp.eq.s32.totalorder %s150, 0
    %s153 = sadd.s32 %s152, 1
    %s154 = scalar_select %p151, %s152, %s153
    %p157 = pneg %p151
    %p158 = scmp.eq.s32.totalorder %s11, 5
    %p159 = por %p157, %p158
    %p160 = scmp.ne.s32.totalorder %s152, %s155
    %p161 = scmp.eq.s32.totalorder %s11, 0
    %p162 = por %p160, %p161
    %p163 = scmp.ne.s32.totalorder %s152, %s155
    %p164 = scmp.eq.s32.totalorder %s16, 5
    %p165 = por %p163, %p164
    %p166 = scmp.ne.s32.totalorder %s155, %s156
    %p167 = scmp.eq.s32.totalorder %s16, 0
    %p168 = por %p166, %p167
    %p169 = scmp.ne.s32.totalorder %s155, %s156
    %p170 = scmp.eq.s32.totalorder %s17, 5
    %p171 = por %p169, %p170
    %p173 = scmp.ne.s32.totalorder %s156, %s172
    %p174 = scmp.eq.s32.totalorder %s17, 0
    %p175 = por %p173, %p174
    %p176 = scmp.le.s32.totalorder 1, %s11
    %p177 = scmp.lt.s32.totalorder %s11, 7
    %p178 = pnand %p176, %p177
    %p179 = pneg %p178
    // Predicated region
    $region9: #{tpu_custom_call.1} parent=5 // pred_check
      _
    $region10: #{tpu_custom_call.1} parent=5 // pred_check_branch
      %181 = sbr.rel (%p178) target = $region12
    $region11: #{tpu_custom_call.1} parent=5 // pred_region
      %s182 = ssub.s32 %s11, 1
      // Predicated region
      $region13: #{tpu_custom_call.1} parent=11 // pred_check
        %p183 = pneg %p72
      $region14: #{tpu_custom_call.1} parent=11 // pred_check_branch
        %185 = sbr.rel (%p183) target = $region16
      $region15: #{tpu_custom_call.1} parent=11 // pred_region
        _
      $region16: #{tpu_custom_call.1} parent=11 // pred_fallthru
        _
      // Predicated region
      $region17: #{tpu_custom_call.1} parent=11 // pred_check
        %p186 = pneg %p93
      $region18: #{tpu_custom_call.1} parent=11 // pred_check_branch
        %188 = sbr.rel (%p186) target = $region20
      $region19: #{tpu_custom_call.1} parent=11 // pred_region
        _
      $region20: #{tpu_custom_call.1} parent=11 // pred_fallthru
        _
      // Predicated region
      $region21: #{tpu_custom_call.1} parent=11 // pred_check
        %p189 = pneg %p114
      $region22: #{tpu_custom_call.1} parent=11 // pred_check_branch
        %191 = sbr.rel (%p189) target = $region24
      $region23: #{tpu_custom_call.1} parent=11 // pred_region
        _
      $region24: #{tpu_custom_call.1} parent=11 // pred_fallthru
        _
    $region12: #{tpu_custom_call.1} parent=5 // pred_fallthru
      _
    %p192 = scmp.lt.s32.totalorder %s11, 6
    // Predicated region
    $region25: #{tpu_custom_call.1} parent=5 // pred_check
      %p193 = pneg %p192
    $region26: #{tpu_custom_call.1} parent=5 // pred_check_branch
      %195 = sbr.rel (%p193) target = $region28
    $region27: #{tpu_custom_call.1} parent=5 // pred_region
      // Predicated region
      $region29: #{tpu_custom_call.1} parent=27 // pred_check
        %p196 = pneg %p45
      $region30: #{tpu_custom_call.1} parent=27 // pred_check_branch
        %198 = sbr.rel (%p196) target = $region32
      $region31: #{tpu_custom_call.1} parent=27 // pred_region
        %p199 = scmp.lt.s32.totalorder %s18, 1
        %s200 = scalar_select %p199, %s18, 1
        %p201 = scmp.lt.s32.totalorder %s19, 2
        %s202 = scalar_select %p201, %s19, 2
        %s203 = smul.addr %s202, 2
        %s204 = smul.addr %s200, 6
        %s205 = sadd.s32 %s203, %s204
        %s206 = smul.addr %s205, 8
        %s207 = scalar_lea.vmem %s0, %s206
      $region32: #{tpu_custom_call.1} parent=27 // pred_fallthru
        _
      // Predicated region
      $region33: #{tpu_custom_call.1} parent=27 // pred_check
        %p208 = pneg %p134
      $region34: #{tpu_custom_call.1} parent=27 // pred_check_branch
        %210 = sbr.rel (%p208) target = $region36
      $region35: #{tpu_custom_call.1} parent=27 // pred_region
        %p211 = scmp.lt.s32.totalorder %s19, 2
        %s212 = scalar_select %p211, %s19, 2
        %s213 = smul.addr %s212, 8
        %s214 = scalar_lea.vmem %s4, %s213
      $region36: #{tpu_custom_call.1} parent=27 // pred_fallthru
        _
    $region28: #{tpu_custom_call.1} parent=5 // pred_fallthru
      _
    %p215 = scmp.le.s32.totalorder 1, %s11
    %p216 = scmp.lt.s32.totalorder %s11, 7
    %p217 = pnand %p215, %p216
    %p218 = pneg %p217
    // Predicated region
    $region37: #{tpu_custom_call.1} parent=5 // pred_check
      _
    $region38: #{tpu_custom_call.1} parent=5 // pred_check_branch
      %220 = sbr.rel (%p217) target = $region40
    $region39: #{tpu_custom_call.1} parent=5 // pred_region
      %s221 = ssub.s32 %s11, 1
      %p222 = scmp.lt.s32.totalorder %s20, 1
      %s223 = scalar_select %p222, %s20, 1
      %p224 = scmp.lt.s32.totalorder %s21, 2
      %s225 = scalar_select %p224, %s21, 2
      %s226 = smul.addr %s225, 2
      %s227 = smul.addr %s223, 6
      %s228 = sadd.s32 %s226, %s227
      %s229 = smul.addr %s228, 8
      %s230 = scalar_lea.vmem %s0, %s229
      %p231 = pneg %p51
      %p232 = pneg %p48
      %p233 = pneg %p72
      %p234 = pneg %p69
      %p235 = pneg %p93
      %p236 = pneg %p90
      %p237 = pneg %p114
      %p238 = pneg %p111
      %p239 = scmp.lt.s32.totalorder %s21, 2
      %s240 = scalar_select %p239, %s21, 2
      %s241 = smul.addr %s240, 8
      %s242 = scalar_lea.vmem %s4, %s241
      %p243 = pneg %p140
      %p244 = pneg %p137
      %p245 = pneg %p168
      %p246 = pneg %p165
      %p247 = scmp.lt.s32.totalorder %s20, 1
      %s248 = scalar_select %p247, %s20, 1
      %p249 = scmp.lt.s32.totalorder %s21, 2
      %s250 = scalar_select %p249, %s21, 2
      %s251 = smul.addr %s248, 3
      %s252 = sadd.s32 %s250, %s251
      %s253 = smul.addr %s252, 8
      %s254 = scalar_lea.vmem %s5, %s253
      %p255 = scmp.lt.s32.totalorder %s20, 1
      %s256 = scalar_select %p255, %s20, 1
      %p257 = scmp.lt.s32.totalorder %s21, 2
      %s258 = scalar_select %p257, %s21, 2
      %s259 = smul.addr %s258, 2
      %s260 = smul.addr %s256, 6
      %s261 = sadd.s32 %s259, %s260
      %s262 = smul.addr %s261, 8
      %s263 = scalar_lea.vmem %s0, %s262
      %p264 = scmp.lt.s32.totalorder %s21, 2
      %s265 = scalar_select %p264, %s21, 2
      %s266 = smul.addr %s265, 8
      %s267 = scalar_lea.vmem %s4, %s266
      %p268 = scmp.lt.s32.totalorder %s20, 1
      %s269 = scalar_select %p268, %s20, 1
      %p270 = scmp.lt.s32.totalorder %s21, 2
      %s271 = scalar_select %p270, %s21, 2
      %s272 = smul.addr %s269, 3
      %s273 = sadd.s32 %s271, %s272
      %s274 = smul.addr %s273, 8
      %s275 = scalar_lea.vmem %s5, %s274
      %v277 = vld [vmem:[%s263] sm:$0xff]
      %v278 = vld [vmem:[%s263 + $0x8] sm:$0x3f]
      %vm279 = vcmask 31744
      %280 = vst.msk [vmem:[#allocation2] sm:$0xff] %vm279, %v277
      %vm281 = vcmask 26624
      %282 = vst.msk [vmem:[#allocation2 + $0x8] sm:$0x7] %vm281, %v278
      %285 = vrot.lane.b32.xlu0 %v277, 4
      %v286 = vpop.permute.xlu0 %285
      %287 = vrot.lane.b32.xlu0 %v278, 4
      %v288 = vpop.permute.xlu0 %287
      %vm291 = vcmask 64545
      %292 = vst.msk [vmem:[#allocation2 - $0x1] sm:$0xfe] %vm291, %v286
      %vm293 = vcmask 60448
      %294 = vst.msk [vmem:[#allocation2 + $0x7] sm:$0xf] %vm293, %v288
      %295 = vrot.lane.b32.xlu0 %v277, 8
      %v296 = vpop.permute.xlu0 %295
      %297 = vrot.lane.b32.xlu0 %v278, 8
      %v298 = vpop.permute.xlu0 %297
      %vm301 = vcmask 97346
      %302 = vst.msk [vmem:[#allocation2 - $0x2] sm:$0xfc] %vm301, %v296
      %vm303 = vcmask 94272
      %304 = vst.msk [vmem:[#allocation2 + $0x6] sm:$0x1f] %vm303, %v298
      %305 = vrot.lane.b32.xlu0 %v277, 12
      %v306 = vpop.permute.xlu0 %305
      %307 = vrot.lane.b32.xlu0 %v278, 12
      %v308 = vpop.permute.xlu0 %307
      %vm311 = vcmask 130147
      %312 = vst.msk [vmem:[#allocation2 - $0x3] sm:$0xf8] %vm311, %v306
      %vm313 = vcmask 128096
      %314 = vst.msk [vmem:[#allocation2 + $0x5] sm:$0x3f] %vm313, %v308
      %vm315 = vcmask 126976
      %316 = vst.msk [vmem:[#allocation2 + $0xb] sm:$0x1f] %vm315, 0.0
      %v317 = vld [vmem:[#allocation2] sm:$0xff]
      %v318 = vld [vmem:[#allocation2 + $0x8] sm:$0xff]
      %v319 = vpack.c.bf16 %v318, %v317
      %v320 = vld [vmem:[%s1] sm:$0xff]
      %v321 = vld [vmem:[%s1 + $0x8] sm:$0xff]
      %v324 = vunpack.c.l.b16 %v320
      %v325 = vunpack.c.h.b16 %v320
      %v326 = vunpack.c.l.b16 %v321
      %v327 = vunpack.c.h.b16 %v321
      %v328 = vpack.c.b16 %v326, %v324
      %v329 = vpack.c.b16 %v327, %v325
      %vm332 = vcmask 130048
      %v334 = vsel %vm332, %v319, 0
      %336 = vmatprep.subr.bf16.mxu0 %v329
      %337 = vmatpush1.bf16.msra.mxu0 %v328
      %338 = vmatprep.subr.bf16.mxu0 0
      %339 = vmatpush1.bf16.msra.mxu0 0
      %340 = vmatprep.subr.bf16.mxu0 0
      %341 = vmatpush1.bf16.msra.mxu0 0
      %342 = vmatprep.subr.bf16.mxu0 0
      %343 = vmatpush1.bf16.msra.mxu0 0
      %344 = vmatprep.subr.bf16.mxu0 0
      %345 = vmatpush1.bf16.msra.mxu0 0
      %346 = vmatprep.subr.bf16.mxu0 0
      %347 = vmatpush1.bf16.msra.mxu0 0
      %348 = vmatprep.subr.bf16.mxu0 0
      %349 = vmatpush1.bf16.msra.mxu0 0
      %350 = vmatprep.subr.bf16.mxu0 0
      %351 = vmatpush1.bf16.msra.mxu0 0
      %352 = vmatprep.subr.bf16.mxu0 0
      %353 = vmatpush1.bf16.msra.mxu0 0
      %354 = vmatprep.subr.bf16.mxu0 0
      %355 = vmatpush1.bf16.msra.mxu0 0
      %356 = vmatprep.subr.bf16.mxu0 0
      %357 = vmatpush1.bf16.msra.mxu0 0
      %358 = vmatprep.subr.bf16.mxu0 0
      %359 = vmatpush1.bf16.msra.mxu0 0
      %360 = vmatprep.subr.bf16.mxu0 0
      %361 = vmatpush1.bf16.msra.mxu0 0
      %362 = vmatprep.subr.bf16.mxu0 0
      %363 = vmatpush1.bf16.msra.mxu0 0
      %364 = vmatprep.subr.bf16.mxu0 0
      %365 = vmatpush1.bf16.msra.mxu0 0
      %366 = vmatprep.subr.bf16.mxu0 0
      %367 = vmatpush1.bf16.msra.mxu0 0
      %368 = vmatprep.mubr.bf16.mxu0 0
      %369 = vmatmul.mubr.bf16.gmra.mrb[0].mxu0 %v334
      %v370 = vpop.f32.mrb[0].mxu0
      %v371 = vadd.f32 0.0, %v370
      %v372 = vpop.f32.mrb[0].mxu0
      %v373 = vadd.f32 0.0, %v372
      %v374 = vpop.f32.mrb[0].mxu0
      %v375 = vadd.f32 0.0, %v374
      %v376 = vpop.f32.mrb[0].mxu0
      %v377 = vadd.f32 0.0, %v376
      %378 = vdwg.mxu0
      %v379 = vmul.f32 %v371, %v371
      %v380 = vmul.f32 %v375, %v375
      %v381 = vmul.f32 %v373, %v373
      %v382 = vmul.f32 %v377, %v377
      %v383 = vadd.f32 %v379, %v381
      %v384 = vadd.f32 %v380, %v382
      %vm385 = vcmp.gt.f32.partialorder %v383, 0.0
      %vm386 = vcmp.gt.f32.partialorder %v384, 0.0
      %v387 = vrsqrt.pop %v383
      %v388 = vrsqrt.pop %v384
      %v389 = vsel %vm385, %v387, 0.0
      %v390 = vsel %vm386, %v388, 0.0
      %v391 = vld [vmem:[%s3] sm:$0x1]
      %v393 = vlaneseq
      %v394 = vshrl.u32 %v393, 7
      %v395 = vsub.s32 0, %v394
      %v396 = vrot.slane %v391, %v395
      %v398 = vmul.f32 %v396, %v389
      %v399 = vmul.f32 %v396, %v390
      %v400 = vsub.f32 1.0, %v398
      %v401 = vsub.f32 1.0, %v399
      %v402 = vmax.f32 %v400, 0.0
      %v403 = vmax.f32 %v401, 0.0
      %v404 = vlaneseq
      %v405 = vshrl.u32 %v404, 7
      %v406 = vadd.s32 %v405, 8
      %s407 = smul.u32 %s21, 8
      %s408 = ssub.s32 %s407, 3
      %v409 = vstv %s408
      %v410 = vadd.s32 %v405, %v409
      %v411 = vadd.s32 %v406, %v409
      %vm412 = vcmp.ge.s32.totalorder %v410, 0
      %vm413 = vcmp.ge.s32.totalorder %v411, 0
      %vm414 = vcmp.lt.s32.totalorder %v410, 17
      %vm415 = vcmp.lt.s32.totalorder %v411, 17
      %vm416 = vmand %vm412, %vm414
      %vm417 = vmand %vm413, %vm415
      %v418 = vsel %vm416, 1, 0
      %v419 = vsel %vm417, 1, 0
      %v420 = vcvt.s32.f32 %v418
      %v421 = vcvt.s32.f32 %v419
      %v422 = vmul.f32 %v402, %v420
      %v423 = vmul.f32 %v403, %v421
      %v424 = vmul.f32 %v371, %v422
      %v425 = vmul.f32 %v375, %v423
      %v426 = vpack.c.bf16 %v425, %v424
      %427 = vst [vmem:[#allocation3] sm:$0xff] %v426
      %v428 = vmul.f32 %v373, %v422
      %v429 = vmul.f32 %v377, %v423
      %v430 = vpack.c.bf16 %v429, %v428
      %431 = vst [vmem:[#allocation3 + $0x8] sm:$0xff] %v430
      %v432 = vld [vmem:[#allocation3] sm:$0xff]
      %v433 = vld [vmem:[#allocation3 + $0x8] sm:$0xff]
      %v434 = vld [vmem:[%s2] sm:$0xf]
      %v435 = vld [vmem:[%s2 + $0x4] sm:$0xf]
      %v436 = vld [vmem:[%s2 + $0x8] sm:$0xf]
      %v437 = vld [vmem:[%s2 + $0xc] sm:$0xf]
      %v438 = vld [vmem:[%s2 + $0x10] sm:$0xf]
      %v439 = vld [vmem:[%s2 + $0x14] sm:$0xf]
      %v440 = vld [vmem:[%s2 + $0x18] sm:$0xf]
      %v441 = vld [vmem:[%s2 + $0x1c] sm:$0xf]
      %v442 = vld [vmem:[%s2 + $0x20] sm:$0xf]
      %v443 = vld [vmem:[%s2 + $0x24] sm:$0xf]
      %v444 = vld [vmem:[%s2 + $0x28] sm:$0xf]
      %v445 = vld [vmem:[%s2 + $0x2c] sm:$0xf]
      %v446 = vld [vmem:[%s2 + $0x30] sm:$0xf]
      %v447 = vld [vmem:[%s2 + $0x34] sm:$0xf]
      %v448 = vld [vmem:[%s2 + $0x38] sm:$0xf]
      %v449 = vld [vmem:[%s2 + $0x3c] sm:$0xf]
      %v450 = vld [vmem:[%s2 + $0x40] sm:$0xf]
      %v451 = vld [vmem:[%s2 + $0x44] sm:$0xf]
      %v452 = vld [vmem:[%s2 + $0x48] sm:$0xf]
      %v453 = vld [vmem:[%s2 + $0x4c] sm:$0xf]
      %v454 = vld [vmem:[%s2 + $0x50] sm:$0xf]
      %v455 = vld [vmem:[%s2 + $0x54] sm:$0xf]
      %v456 = vld [vmem:[%s2 + $0x58] sm:$0xf]
      %v457 = vld [vmem:[%s2 + $0x5c] sm:$0xf]
      %v458 = vld [vmem:[%s2 + $0x60] sm:$0xf]
      %v459 = vld [vmem:[%s2 + $0x64] sm:$0xf]
      %v460 = vld [vmem:[%s2 + $0x68] sm:$0xf]
      %v461 = vld [vmem:[%s2 + $0x6c] sm:$0xf]
      %v462 = vld [vmem:[%s2 + $0x70] sm:$0xf]
      %v463 = vld [vmem:[%s2 + $0x74] sm:$0xf]
      %v464 = vld [vmem:[%s2 + $0x78] sm:$0xf]
      %v465 = vld [vmem:[%s2 + $0x7c] sm:$0xf]
      %v498 = vunpack.c.l.b16 %v434
      %v499 = vunpack.c.l.b16 %v435
      %v500 = vunpack.c.l.b16 %v436
      %v501 = vunpack.c.l.b16 %v437
      %v502 = vunpack.c.l.b16 %v438
      %v503 = vunpack.c.l.b16 %v439
      %v504 = vunpack.c.l.b16 %v440
      %v505 = vunpack.c.l.b16 %v441
      %v506 = vunpack.c.l.b16 %v442
      %v507 = vunpack.c.l.b16 %v443
      %v508 = vunpack.c.l.b16 %v444
      %v509 = vunpack.c.l.b16 %v445
      %v510 = vunpack.c.l.b16 %v446
      %v511 = vunpack.c.l.b16 %v447
      %v512 = vunpack.c.l.b16 %v448
      %v513 = vunpack.c.l.b16 %v449
      %v514 = vunpack.c.l.b16 %v450
      %v515 = vunpack.c.l.b16 %v451
      %v516 = vunpack.c.l.b16 %v452
      %v517 = vunpack.c.l.b16 %v453
      %v518 = vunpack.c.l.b16 %v454
      %v519 = vunpack.c.l.b16 %v455
      %v520 = vunpack.c.l.b16 %v456
      %v521 = vunpack.c.l.b16 %v457
      %v522 = vunpack.c.l.b16 %v458
      %v523 = vunpack.c.l.b16 %v459
      %v524 = vunpack.c.l.b16 %v460
      %v525 = vunpack.c.l.b16 %v461
      %v526 = vunpack.c.l.b16 %v462
      %v527 = vunpack.c.l.b16 %v463
      %v528 = vunpack.c.l.b16 %v464
      %v529 = vunpack.c.l.b16 %v465
      %v530 = vpack.c.b16 %v499, %v498
      %v531 = vpack.c.b16 %v501, %v500
      %v532 = vpack.c.b16 %v503, %v502
      %v533 = vpack.c.b16 %v505, %v504
      %v534 = vpack.c.b16 %v507, %v506
      %v535 = vpack.c.b16 %v509, %v508
      %v536 = vpack.c.b16 %v511, %v510
      %v537 = vpack.c.b16 %v513, %v512
      %v538 = vpack.c.b16 %v515, %v514
      %v539 = vpack.c.b16 %v517, %v516
      %v540 = vpack.c.b16 %v519, %v518
      %v541 = vpack.c.b16 %v521, %v520
      %v542 = vpack.c.b16 %v523, %v522
      %v543 = vpack.c.b16 %v525, %v524
      %v544 = vpack.c.b16 %v527, %v526
      %v545 = vpack.c.b16 %v529, %v528
      %562 = vmatprep.subr.bf16.mxu0 0
      %563 = vmatpush1.bf16.msra.mxu0 %v530
      %564 = vmatprep.subr.bf16.mxu0 0
      %565 = vmatpush1.bf16.msra.mxu0 %v531
      %566 = vmatprep.subr.bf16.mxu0 0
      %567 = vmatpush1.bf16.msra.mxu0 %v532
      %568 = vmatprep.subr.bf16.mxu0 0
      %569 = vmatpush1.bf16.msra.mxu0 %v533
      %570 = vmatprep.subr.bf16.mxu0 0
      %571 = vmatpush1.bf16.msra.mxu0 %v534
      %572 = vmatprep.subr.bf16.mxu0 0
      %573 = vmatpush1.bf16.msra.mxu0 %v535
      %574 = vmatprep.subr.bf16.mxu0 0
      %575 = vmatpush1.bf16.msra.mxu0 %v536
      %576 = vmatprep.subr.bf16.mxu0 0
      %577 = vmatpush1.bf16.msra.mxu0 %v537
      %578 = vmatprep.subr.bf16.mxu0 0
      %579 = vmatpush1.bf16.msra.mxu0 %v538
      %580 = vmatprep.subr.bf16.mxu0 0
      %581 = vmatpush1.bf16.msra.mxu0 %v539
      %582 = vmatprep.subr.bf16.mxu0 0
      %583 = vmatpush1.bf16.msra.mxu0 %v540
      %584 = vmatprep.subr.bf16.mxu0 0
      %585 = vmatpush1.bf16.msra.mxu0 %v541
      %586 = vmatprep.subr.bf16.mxu0 0
      %587 = vmatpush1.bf16.msra.mxu0 %v542
      %588 = vmatprep.subr.bf16.mxu0 0
      %589 = vmatpush1.bf16.msra.mxu0 %v543
      %590 = vmatprep.subr.bf16.mxu0 0
      %591 = vmatpush1.bf16.msra.mxu0 %v544
      %592 = vmatprep.subr.bf16.mxu0 0
      %593 = vmatpush1.bf16.msra.mxu0 %v545
      %594 = vmatprep.mubr.bf16.mxu0 %v433
      %595 = vmatmul.mubr.bf16.gmra.mrb[0].mxu0 %v432
      %v596 = vpop.f32.mrb[0].mxu0
      %v597 = vadd.f32 0.0, %v596
      %v598 = vpop.f32.mrb[0].mxu0
      %v599 = vpop.f32.mrb[0].mxu0
      %v600 = vadd.f32 0.0, %v599
      %v601 = vpop.f32.mrb[0].mxu0
      %602 = vdwg.mxu0
      %vm605 = vcmask 1040384
      %v606 = vrot.slane %v597, 7
      %v607 = vrot.slane %v600, 7
      %v608 = vsel %vm605, %v606, %v607
      %609 = vrot.lane.b32.xlu0 %v606, 124
      %v610 = vpop.permute.xlu0 %609
      %611 = vrot.lane.b32.xlu0 %v608, 124
      %v612 = vpop.permute.xlu0 %611
      %v615 = vadd.f32 %v597, %v610
      %v616 = vadd.f32 %v600, %v612
      %vm617 = vcmask 1041408
      %v618 = vrot.slane %v597, 6
      %v619 = vrot.slane %v600, 6
      %v620 = vsel %vm617, %v618, %v619
      %621 = vrot.lane.b32.xlu0 %v618, 120
      %v622 = vpop.permute.xlu0 %621
      %623 = vrot.lane.b32.xlu0 %v620, 120
      %v624 = vpop.permute.xlu0 %623
      %v627 = vadd.f32 %v615, %v622
      %v628 = vadd.f32 %v616, %v624
      %v629 = vrot.slane %v597, 5
      %630 = vrot.lane.b32.xlu0 %v629, 116
      %v631 = vpop.permute.xlu0 %630
      %v633 = vadd.f32 %v627, %v631
      %v634 = vadd.f32 %v628, %v631
      %v635 = vld [vmem:[%s267] sm:$0xff]
      %v637 = vrot.slane %v635, 5
      %v639 = vmul.f32 %v633, %v637
      %v640 = vmul.f32 %v634, %v637
      %vm641 = vcmask 31747
      %642 = vst.msk [vmem:[%s275 - $0x3] sm:$0xf8] %vm641, %v639
      %643 = vst.msk [vmem:[%s275 + $0x5] sm:$0x7] %vm281, %v640
      %p644 = scmp.lt.s32.totalorder %s20, 1
      %s645 = scalar_select %p644, %s20, 1
      %p646 = scmp.lt.s32.totalorder %s21, 2
      %s647 = scalar_select %p646, %s21, 2
      %s648 = smul.addr %s645, 3
      %s649 = sadd.s32 %s647, %s648
      %s650 = smul.addr %s649, 8
      %s651 = scalar_lea.vmem %s5, %s650
      // Predicated region
      $region41: #{tpu_custom_call.1} parent=39 // pred_check
        %p652 = pneg %p165
      $region42: #{tpu_custom_call.1} parent=39 // pred_check_branch
        %654 = sbr.rel (%p652) target = $region44
      $region43: #{tpu_custom_call.1} parent=39 // pred_region
        _
      $region44: #{tpu_custom_call.1} parent=39 // pred_fallthru
        _
    $region40: #{tpu_custom_call.1} parent=5 // pred_fallthru
      _
    %p655 = scmp.le.s32.totalorder 2, %s11
    // Predicated region
    $region45: #{tpu_custom_call.1} parent=5 // pred_check
      %p656 = pneg %p655
    $region46: #{tpu_custom_call.1} parent=5 // pred_check_branch
      %658 = sbr.rel (%p656) target = $region48
    $region47: #{tpu_custom_call.1} parent=5 // pred_region
      %s659 = ssub.s32 %s11, 2
      // Predicated region
      $region49: #{tpu_custom_call.1} parent=47 // pred_check
        %p660 = pneg %p171
      $region50: #{tpu_custom_call.1} parent=47 // pred_check_branch
        %662 = sbr.rel (%p660) target = $region52
      $region51: #{tpu_custom_call.1} parent=47 // pred_region
        %p663 = scmp.lt.s32.totalorder %s22, 1
        %s664 = scalar_select %p663, %s22, 1
        %p665 = scmp.lt.s32.totalorder %s23, 2
        %s666 = scalar_select %p665, %s23, 2
        %s667 = smul.addr %s664, 3
        %s668 = sadd.s32 %s666, %s667
        %s669 = smul.addr %s668, 8
        %s670 = scalar_lea.vmem %s5, %s669
      $region52: #{tpu_custom_call.1} parent=47 // pred_fallthru
        _
    $region48: #{tpu_custom_call.1} parent=5 // pred_fallthru
      _
  $region6: #{tpu_custom_call.1} parent=0 // loop_footer
    %s15 = sadd.s32 1, %s11
  $region7: #{tpu_custom_call.1} parent=0 // loop_footer_branch
    %10 = sbr.rel target = $region3
  $region8: #{tpu_custom_call.1} parent=0 // loop_exit
    _

</llo_original>
